<compile_context>
chip_gen: v6e
topology: v6e:2x2x1
jax: 0.10.0
libtpu: 0.0.40
codegen_flags: <defaults>
</compile_context>

<pallas_src>
import functools

import jax
import jax.numpy as jnp
from jax import lax
from jax.experimental import pallas as pl
from jax.experimental.pallas import tpu as pltpu


# ------------------------------- fused kernel --------------------------------
def _fused_forward_kernel(*refs, dims, block_b):
    """Fused forward for one block of `block_b` samples.

    refs layout:
      [ x_ref,                               # (B, H, W) input tile (channel squeezed)
        (bcat, bw) per conv layer,           # expanded conv weights / bias rows
        lwr, lb,                             # rearranged Linear weight / bias
        o_ref,                               # (B, ncls) output tile
        (act, pat, cp) per conv layer ]      # VMEM scratch
    """
    nl = len(dims)
    B = block_b
    x_ref = refs[0]
    w_refs = refs[1:1 + 2 * nl]
    lwr_ref = refs[1 + 2 * nl]
    lb_ref = refs[2 + 2 * nl]
    o_ref = refs[3 + 2 * nl]
    s_refs = refs[4 + 2 * nl:]
    f32 = jnp.float32

    # Layer-0 input -> interior rows of the vertically padded activation (cin0 == 1).
    _, _, h0, w0 = dims[0]
    s_refs[0][:, 1:h0 + 1, :] = x_ref[...]

    logits = None
    for li, (cin, cout, h, w) in enumerate(dims):
        hh, wh = h // 2, w // 2
        cw = cin * w                      # activation lane width (col = ci*w + x)
        npool = cout * wh                 # pooled-column output lane width
        bcat_ref, bw_ref = w_refs[2 * li], w_refs[2 * li + 1]
        act_s, pat_s, cp_s = s_refs[3 * li], s_refs[3 * li + 1], s_refs[3 * li + 2]
        mmdt = pat_s.dtype

        # Zero only the two vertical halo rows (interior is fully overwritten every step).
        act_s[:, 0:1, :] = jnp.zeros((B, 1, cw), dtype=act_s.dtype)
        act_s[:, h + 1:h + 2, :] = jnp.zeros((B, 1, cw), dtype=act_s.dtype)

        # im2col: only dy-shifted row slices (dx taps + horizontal padding are folded into bcat).
        #   pat[b*h + y, dy*cw + ci*w + x] = act[b, y + dy, ci*w + x]
        for dy in range(3):
            sl = act_s[:, dy:dy + h, :]                       # (B, h, cw)
            pat_s[:, dy * cw:(dy + 1) * cw] = sl.reshape(B * h, cw).astype(mmdt)

        # Conv + even/odd-column half of the 2x2 max pool in ONE MXU matmul,
        # then bias + ReLU (max/ReLU commute; bias constant over the pool window).
        pm = jnp.dot(pat_s[...], bcat_ref[...], preferred_element_type=f32)  # (B*h, 2*npool)
        conv = jnp.maximum(pm[:, :npool], pm[:, npool:]) + bw_ref[...]
        cp_s[...] = jnp.maximum(conv, 0.0)                                   # (B*h, npool)

        if li + 1 < nl:
            # Row half of the pool: 2 strided loads + 1 max + 1 dense store.
            nxt_act = s_refs[3 * (li + 1)]
            rowpool = jnp.maximum(cp_s[pl.ds(0, B * hh, 2), :],
                                  cp_s[pl.ds(1, B * hh, 2), :])              # (B*hh, npool)
            nxt_act[:, 1:hh + 1, :] = rowpool.reshape(B, hh, npool)
        else:
            # Row half of the pool fused with the Linear layer (each dot has M=B rows).
            acc = lb_ref[...]                                                # (1, ncls)
            for r in range(hh):
                rowmax = jnp.maximum(cp_s[pl.ds(2 * r, B, h), :],
                                     cp_s[pl.ds(2 * r + 1, B, h), :])        # (B, npool)
                acc = acc + jnp.dot(rowmax.astype(lwr_ref.dtype), lwr_ref[r],
                                    preferred_element_type=f32)
            logits = acc                                                     # (B, ncls)

    # Softmax(dim=1) with exact normalization.
    m = jnp.max(logits, axis=1, keepdims=True)
    e = jnp.exp(logits - m)
    s = jnp.sum(e, axis=1, keepdims=True)
    o_ref[...] = e / s


# ------------------------------ weight expansion ------------------------------
def _expand_conv_weights(w, b, width, matmul_dtype):
    """Fold Conv2d(3x3) dx taps, horizontal zero padding and the even/odd pooled-column
    selection into a single matmul RHS.

    w: (cout, cin, 3, 3), b: (cout,), width: spatial width W of this layer's input.
    Returns bcat: (3*cin*W, 2*cout*(W//2)) in matmul_dtype and bw: (1, cout*(W//2)) f32 with
      (patches @ bcat)[row, half*cout*wh + co*wh + x'] = conv_nobias[co, y, 2*x' + half]
    where patches[row, (dy*cin + ci)*W + x] = input[ci, y + dy - 1, x]  (rows y-1 / y+h are 0).
    """
    cout, cin = w.shape[0], w.shape[1]
    wh = width // 2
    xs = jnp.arange(width)
    # sel[half, x, x', dx] = [ x == 2*x' + half + dx - 1 ]  (out-of-range taps == zero padding)
    sel = (xs[None, :, None, None] ==
           (2 * jnp.arange(wh)[None, None, :, None]
            + jnp.arange(2)[:, None, None, None]
            + jnp.arange(3)[None, None, None, :] - 1)).astype(jnp.float32)
    # w[o,i,dy,dx], sel[h,x,p,dx] -> bcat[dy, ci, x, half, co, x']
    bcat = jnp.einsum("oiyd,hxpd->yixhop", w.astype(jnp.float32), sel)
    bcat = bcat.reshape(3 * cin * width, 2 * cout * wh).astype(matmul_dtype)
    bw = jnp.repeat(b.astype(jnp.float32), wh).reshape(1, cout * wh)
    return bcat, bw


# --------------------------------- wrapper ------------------------------------
def emotion_classification_forward(x, params, *, block_batch=8,
                                   matmul_dtype=jnp.bfloat16):
    """x: (N, 1, H, W) f32; returns (N, num_classes) softmax probabilities.

    block_batch: samples per grid step (8 -> M=128 MXU rows at H=16; use 16 on v6e/v7x).
    matmul_dtype: MXU operand dtype (bf16 on v6e/v7x; pass jnp.float32 on v5e if preferred).
    """
    n, cin, h, w = x.shape
    assert cin == 1, "module's first conv always has in_channels=1"
    convs = params["conv"]
    ncls = params["lin_w"].shape[0]
    h0, w0 = h, w

    dims = []
    weights = []
    for (cwt, cb) in convs:
        cout = cwt.shape[0]
        assert h % 2 == 0 and w % 2 == 0
        bcat, bw = _expand_conv_weights(cwt, cb, w, matmul_dtype)
        weights += [bcat, bw]
        dims.append((cin, cout, h, w))
        cin, h, w = cout, h // 2, w // 2

    # Rearrange Linear weight so logits = sum_r pooled_row_r @ lwr[r] reproduces
    # nn.Flatten()'s row-major (cout, h, w) ordering.  (cin, h, w) are now the final dims.
    lw4 = params["lin_w"].reshape(ncls, cin, h, w).astype(jnp.float32)     # [c, co, r, x']
    lwr = jnp.transpose(lw4, (2, 1, 3, 0)).reshape(h, cin * w, ncls).astype(matmul_dtype)
    lb = params["lin_b"].reshape(1, ncls).astype(jnp.float32)

    # Pad batch to a multiple of the block size (no-op when already divisible).
    bb = block_batch
    n_pad = (-n) % bb
    if n_pad:
        x = jnp.pad(x, ((0, n_pad), (0, 0), (0, 0), (0, 0)))
    n_tot = n + n_pad

    kernel = functools.partial(_fused_forward_kernel, dims=tuple(dims), block_b=bb)

    in_specs = [pl.BlockSpec((bb, None, h0, w0), lambda i: (i, 0, 0, 0))]
    for arr in weights + [lwr, lb]:
        in_specs.append(pl.BlockSpec(arr.shape, lambda i, _nd=arr.ndim: (0,) * _nd))

    scratch_shapes = []
    for (ci, co, lh, lww) in dims:
        scratch_shapes += [
            pltpu.VMEM((bb, lh + 2, ci * lww), jnp.float32),       # vertically padded activation
            pltpu.VMEM((bb * lh, 3 * ci * lww), matmul_dtype),     # dy-only im2col patches
            pltpu.VMEM((bb * lh, co * (lww // 2)), jnp.float32),   # ReLU + column-pooled conv out
        ]

    out = pl.pallas_call(
        kernel,
        out_shape=jax.ShapeDtypeStruct((n_tot, ncls), jnp.float32),
        grid=(n_tot // bb,),
        in_specs=in_specs,
        out_specs=pl.BlockSpec((bb, ncls), lambda i: (i, 0)),
        scratch_shapes=scratch_shapes,
        compiler_params=pltpu.CompilerParams(dimension_semantics=("parallel",)),
    )(x, *weights, lwr, lb)
    return out[:n]


# ----------------------------- pure-JAX reference -----------------------------
def reference_forward(x, params):
    out = x
    for (w, b) in params["conv"]:
        out = lax.conv_general_dilated(
            out, w, window_strides=(1, 1), padding=((1, 1), (1, 1)),
            dimension_numbers=("NCHW", "OIHW", "NCHW"))
        out = out + b[None, :, None, None]
        out = jnp.maximum(out, 0.0)
        out = lax.reduce_window(out, -jnp.inf, lax.max,
                                (1, 1, 2, 2), (1, 1, 2, 2), "VALID")
    flat = out.reshape(out.shape[0], -1)
    logits = flat @ params["lin_w"].T + params["lin_b"]
    return jax.nn.softmax(logits, axis=1)


# --------------------------------- params ------------------------------------
def init_params(key, conf):
    ch, layers, ncls = conf["ch"], conf["count_layers"], conf["count_class"]
    out_chen = ch * 2 ** (layers - 1)
    out_x = conf["segment_size"] // conf["hop_length"] // 2 ** layers
    out_y = conf["n_mels"] // 2 ** layers
    in_linear = out_chen * out_x * out_y

    keys = jax.random.split(key, 2 * layers + 2)
    convs = []
    cin = 1
    for i in range(layers):
        cout = ch * 2 ** i
        w = 0.1 * jax.random.normal(keys[2 * i], (cout, cin, 3, 3), jnp.float32)
        b = 0.1 * jax.random.normal(keys[2 * i + 1], (cout,), jnp.float32)
        convs.append((w, b))
        cin = cout
    lin_w = 0.05 * jax.random.normal(keys[-2], (ncls, in_linear), jnp.float32)
    lin_b = 0.05 * jax.random.normal(keys[-1], (ncls,), jnp.float32)
    return {"conv": convs, "lin_w": lin_w, "lin_b": lin_b}


if __name__ == "__main__":
    # conf: count_class=4, count_layers=2, ch=4, 16 time frames x 16 mel bins
    conf = dict(count_class=4, count_layers=2, ch=4,
                segment_size=1024, hop_length=64, n_mels=16)

    key = jax.random.PRNGKey(0)
    pkey, xkey = jax.random.split(key)
    params = init_params(pkey, conf)

    # input: (N=16, C=1, H=segment_size//hop_length=16, W=n_mels=16)
    # block_batch=8 -> grid of 2 steps so both v7x TensorCores get work.
    x = jax.random.normal(xkey, (16, 1, 16, 16), jnp.float32)

    out = emotion_classification_forward(x, params, block_batch=8,
                                         matmul_dtype=jnp.bfloat16)
    out = jax.block_until_ready(out)

    ref = jax.block_until_ready(reference_forward(x, params))
    assert out.shape == (16, conf["count_class"])
    # bf16 MXU operands (f32 accumulation) -> loosened, but still meaningful, tolerance.
    assert jnp.allclose(out, ref, rtol=3e-2, atol=1.5e-2), (out, ref)
    # exact softmax normalization inside the kernel
    assert jnp.allclose(jnp.sum(out, axis=1), 1.0, atol=1e-5)

    # TODO(synk): Dropout(0.25) is treated as identity (eval semantics); training mode would
    # need pltpu.prng_seed / prng_random_bits masking.
    print("KERNEL_OK")
</pallas_src>

<mosaic_0001>
module attributes {stable_mosaic.version = 11 : i64} {
  func.func @_fused_forward_kernel(%arg0: i32, %arg1: memref<8x1x16x16xf32, #tpu.memory_space<vmem>>, %arg2: memref<48x64xbf16, #tpu.memory_space<vmem>>, %arg3: memref<1x32xf32, #tpu.memory_space<vmem>>, %arg4: memref<96x64xbf16, #tpu.memory_space<vmem>>, %arg5: memref<1x32xf32, #tpu.memory_space<vmem>>, %arg6: memref<4x32x4xbf16, #tpu.memory_space<vmem>>, %arg7: memref<1x4xf32, #tpu.memory_space<vmem>>, %arg8: memref<8x4xf32, #tpu.memory_space<vmem>>, %arg9: memref<8x18x16xf32, #tpu.memory_space<vmem>>, %arg10: memref<128x48xbf16, #tpu.memory_space<vmem>>, %arg11: memref<128x32xf32, #tpu.memory_space<vmem>>, %arg12: memref<8x10x32xf32, #tpu.memory_space<vmem>>, %arg13: memref<64x96xbf16, #tpu.memory_space<vmem>>, %arg14: memref<64x32xf32, #tpu.memory_space<vmem>>) attributes {dimension_semantics = [#tpu.dimension_semantics<parallel>], iteration_bounds = array<i64: 2>, scalar_prefetch = 0 : i64, scratch_operands = 6 : i64, tpu.core_type = #tpu.core_type<tc>, window_params = [{transform_indices = @transform_0, window_bounds = array<i64: 8, 1, 16, 16>}, {pipeline_mode = #tpu.pipeline_mode<synchronous>, transform_indices = @transform_1, window_bounds = array<i64: 48, 64>}, {pipeline_mode = #tpu.pipeline_mode<synchronous>, transform_indices = @transform_2, window_bounds = array<i64: 1, 32>}, {pipeline_mode = #tpu.pipeline_mode<synchronous>, transform_indices = @transform_3, window_bounds = array<i64: 96, 64>}, {pipeline_mode = #tpu.pipeline_mode<synchronous>, transform_indices = @transform_4, window_bounds = array<i64: 1, 32>}, {pipeline_mode = #tpu.pipeline_mode<synchronous>, transform_indices = @transform_5, window_bounds = array<i64: 4, 32, 4>}, {pipeline_mode = #tpu.pipeline_mode<synchronous>, transform_indices = @transform_6, window_bounds = array<i64: 1, 4>}, {transform_indices = @transform_7, window_bounds = array<i64: 8, 4>}]} {
    %c0 = arith.constant 0 : index
    %c0_0 = arith.constant 0 : index
    %c0_1 = arith.constant 0 : index
    %c0_2 = arith.constant 0 : index
    %0 = vector.load %arg1[%c0, %c0_0, %c0_1, %c0_2] : memref<8x1x16x16xf32, #tpu.memory_space<vmem>>, vector<8x1x16x16xf32>
    %1 = vector.shape_cast %0 : vector<8x1x16x16xf32> to vector<8x16x16xf32>
    %c0_3 = arith.constant 0 : index
    %c1 = arith.constant 1 : index
    %c0_4 = arith.constant 0 : index
    %2 = vector.load %arg9[%c0_3, %c1, %c0_4] : memref<8x18x16xf32, #tpu.memory_space<vmem>>, vector<8x16x16xf32>
    tpu.vector_store %arg9[%c0_3, %c1, %c0_4], %1 {strides = array<i32>} : memref<8x18x16xf32, #tpu.memory_space<vmem>>, vector<8x16x16xf32>,
    %cst = arith.constant 0.000000e+00 : f32
    %3 = vector.broadcast %cst : f32 to vector<8x1x16xf32>
    %c0_5 = arith.constant 0 : index
    %c0_6 = arith.constant 0 : index
    %c0_7 = arith.constant 0 : index
    %4 = vector.load %arg9[%c0_5, %c0_6, %c0_7] : memref<8x18x16xf32, #tpu.memory_space<vmem>>, vector<8x1x16xf32>
    tpu.vector_store %arg9[%c0_5, %c0_6, %c0_7], %3 {strides = array<i32>} : memref<8x18x16xf32, #tpu.memory_space<vmem>>, vector<8x1x16xf32>,
    %cst_8 = arith.constant 0.000000e+00 : f32
    %5 = vector.broadcast %cst_8 : f32 to vector<8x1x16xf32>
    %c0_9 = arith.constant 0 : index
    %c17 = arith.constant 17 : index
    %c0_10 = arith.constant 0 : index
    %6 = vector.load %arg9[%c0_9, %c17, %c0_10] : memref<8x18x16xf32, #tpu.memory_space<vmem>>, vector<8x1x16xf32>
    tpu.vector_store %arg9[%c0_9, %c17, %c0_10], %5 {strides = array<i32>} : memref<8x18x16xf32, #tpu.memory_space<vmem>>, vector<8x1x16xf32>,
    %c0_11 = arith.constant 0 : index
    %c0_12 = arith.constant 0 : index
    %c0_13 = arith.constant 0 : index
    %7 = vector.load %arg9[%c0_11, %c0_12, %c0_13] : memref<8x18x16xf32, #tpu.memory_space<vmem>>, vector<8x16x16xf32>
    %8 = vector.shape_cast %7 : vector<8x16x16xf32> to vector<128x16xf32>
    %9 = arith.truncf %8 : vector<128x16xf32> to vector<128x16xbf16>
    %c0_14 = arith.constant 0 : index
    %c0_15 = arith.constant 0 : index
    %10 = vector.load %arg10[%c0_14, %c0_15] : memref<128x48xbf16, #tpu.memory_space<vmem>>, vector<128x16xbf16>
    tpu.vector_store %arg10[%c0_14, %c0_15], %9 {strides = array<i32>} : memref<128x48xbf16, #tpu.memory_space<vmem>>, vector<128x16xbf16>,
    %c0_16 = arith.constant 0 : index
    %c1_17 = arith.constant 1 : index
    %c0_18 = arith.constant 0 : index
    %11 = vector.load %arg9[%c0_16, %c1_17, %c0_18] : memref<8x18x16xf32, #tpu.memory_space<vmem>>, vector<8x16x16xf32>
    %12 = vector.shape_cast %11 : vector<8x16x16xf32> to vector<128x16xf32>
    %13 = arith.truncf %12 : vector<128x16xf32> to vector<128x16xbf16>
    %c0_19 = arith.constant 0 : index
    %c16 = arith.constant 16 : index
    %14 = vector.load %arg10[%c0_19, %c16] : memref<128x48xbf16, #tpu.memory_space<vmem>>, vector<128x16xbf16>
    tpu.vector_store %arg10[%c0_19, %c16], %13 {strides = array<i32>} : memref<128x48xbf16, #tpu.memory_space<vmem>>, vector<128x16xbf16>,
    %c0_20 = arith.constant 0 : index
    %c2 = arith.constant 2 : index
    %c0_21 = arith.constant 0 : index
    %15 = vector.load %arg9[%c0_20, %c2, %c0_21] : memref<8x18x16xf32, #tpu.memory_space<vmem>>, vector<8x16x16xf32>
    %16 = vector.shape_cast %15 : vector<8x16x16xf32> to vector<128x16xf32>
    %17 = arith.truncf %16 : vector<128x16xf32> to vector<128x16xbf16>
    %c0_22 = arith.constant 0 : index
    %c32 = arith.constant 32 : index
    %18 = vector.load %arg10[%c0_22, %c32] : memref<128x48xbf16, #tpu.memory_space<vmem>>, vector<128x16xbf16>
    tpu.vector_store %arg10[%c0_22, %c32], %17 {strides = array<i32>} : memref<128x48xbf16, #tpu.memory_space<vmem>>, vector<128x16xbf16>,
    %c0_23 = arith.constant 0 : index
    %c0_24 = arith.constant 0 : index
    %19 = vector.load %arg10[%c0_23, %c0_24] : memref<128x48xbf16, #tpu.memory_space<vmem>>, vector<128x48xbf16>
    %c0_25 = arith.constant 0 : index
    %c0_26 = arith.constant 0 : index
    %20 = vector.load %arg2[%c0_25, %c0_26] : memref<48x64xbf16, #tpu.memory_space<vmem>>, vector<48x64xbf16>
    %cst_27 = arith.constant dense<0.000000e+00> : vector<128x64xf32>
    %21 = tpu.matmul %19, %20, %cst_27 {dimension_numbers = #tpu.dot_dimension_numbers<[1], [0], [0], [1], [0, 0, 1, 1], [], []>} : vector<128x48xbf16>, vector<48x64xbf16>, vector<128x64xf32> -> vector<128x64xf32>
    %22 = vector.extract_strided_slice %21 {offsets = [0, 0], sizes = [128, 32], strides = [1, 1]} : vector<128x64xf32> to vector<128x32xf32>
    %23 = vector.extract_strided_slice %21 {offsets = [0, 32], sizes = [128, 32], strides = [1, 1]} : vector<128x64xf32> to vector<128x32xf32>
    %24 = arith.maximumf %22, %23 : vector<128x32xf32>
    %c0_28 = arith.constant 0 : index
    %c0_29 = arith.constant 0 : index
    %25 = vector.load %arg3[%c0_28, %c0_29] : memref<1x32xf32, #tpu.memory_space<vmem>>, vector<1x32xf32>
    %26 = vector.broadcast %25 : vector<1x32xf32> to vector<128x32xf32>
    %27 = arith.addf %24, %26 : vector<128x32xf32>
    %cst_30 = arith.constant 0.000000e+00 : f32
    %28 = vector.broadcast %cst_30 : f32 to vector<128x32xf32>
    %29 = arith.maximumf %27, %28 : vector<128x32xf32>
    %c0_31 = arith.constant 0 : index
    %c0_32 = arith.constant 0 : index
    %30 = vector.load %arg11[%c0_31, %c0_32] : memref<128x32xf32, #tpu.memory_space<vmem>>, vector<128x32xf32>
    tpu.vector_store %arg11[%c0_31, %c0_32], %29 {strides = array<i32>} : memref<128x32xf32, #tpu.memory_space<vmem>>, vector<128x32xf32>,
    %c0_33 = arith.constant 0 : index
    %c0_34 = arith.constant 0 : index
    %31 = tpu.strided_load %arg11[%c0_33, %c0_34] {strides = array<i32: 2, 1>} : memref<128x32xf32, #tpu.memory_space<vmem>>, vector<64x32xf32>
    %c1_35 = arith.constant 1 : index
    %c0_36 = arith.constant 0 : index
    %32 = tpu.strided_load %arg11[%c1_35, %c0_36] {strides = array<i32: 2, 1>} : memref<128x32xf32, #tpu.memory_space<vmem>>, vector<64x32xf32>
    %33 = arith.maximumf %31, %32 : vector<64x32xf32>
    %34 = vector.shape_cast %33 : vector<64x32xf32> to vector<8x8x32xf32>
    %c0_37 = arith.constant 0 : index
    %c1_38 = arith.constant 1 : index
    %c0_39 = arith.constant 0 : index
    %35 = vector.load %arg12[%c0_37, %c1_38, %c0_39] : memref<8x10x32xf32, #tpu.memory_space<vmem>>, vector<8x8x32xf32>
    tpu.vector_store %arg12[%c0_37, %c1_38, %c0_39], %34 {strides = array<i32>} : memref<8x10x32xf32, #tpu.memory_space<vmem>>, vector<8x8x32xf32>,
    %cst_40 = arith.constant 0.000000e+00 : f32
    %36 = vector.broadcast %cst_40 : f32 to vector<8x1x32xf32>
    %c0_41 = arith.constant 0 : index
    %c0_42 = arith.constant 0 : index
    %c0_43 = arith.constant 0 : index
    %37 = vector.load %arg12[%c0_41, %c0_42, %c0_43] : memref<8x10x32xf32, #tpu.memory_space<vmem>>, vector<8x1x32xf32>
    tpu.vector_store %arg12[%c0_41, %c0_42, %c0_43], %36 {strides = array<i32>} : memref<8x10x32xf32, #tpu.memory_space<vmem>>, vector<8x1x32xf32>,
    %cst_44 = arith.constant 0.000000e+00 : f32
    %38 = vector.broadcast %cst_44 : f32 to vector<8x1x32xf32>
    %c0_45 = arith.constant 0 : index
    %c9 = arith.constant 9 : index
    %c0_46 = arith.constant 0 : index
    %39 = vector.load %arg12[%c0_45, %c9, %c0_46] : memref<8x10x32xf32, #tpu.memory_space<vmem>>, vector<8x1x32xf32>
    tpu.vector_store %arg12[%c0_45, %c9, %c0_46], %38 {strides = array<i32>} : memref<8x10x32xf32, #tpu.memory_space<vmem>>, vector<8x1x32xf32>,
    %c0_47 = arith.constant 0 : index
    %c0_48 = arith.constant 0 : index
    %c0_49 = arith.constant 0 : index
    %40 = vector.load %arg12[%c0_47, %c0_48, %c0_49] : memref<8x10x32xf32, #tpu.memory_space<vmem>>, vector<8x8x32xf32>
    %41 = vector.shape_cast %40 : vector<8x8x32xf32> to vector<64x32xf32>
    %42 = arith.truncf %41 : vector<64x32xf32> to vector<64x32xbf16>
    %c0_50 = arith.constant 0 : index
    %c0_51 = arith.constant 0 : index
    %43 = vector.load %arg13[%c0_50, %c0_51] : memref<64x96xbf16, #tpu.memory_space<vmem>>, vector<64x32xbf16>
    tpu.vector_store %arg13[%c0_50, %c0_51], %42 {strides = array<i32>} : memref<64x96xbf16, #tpu.memory_space<vmem>>, vector<64x32xbf16>,
    %c0_52 = arith.constant 0 : index
    %c1_53 = arith.constant 1 : index
    %c0_54 = arith.constant 0 : index
    %44 = vector.load %arg12[%c0_52, %c1_53, %c0_54] : memref<8x10x32xf32, #tpu.memory_space<vmem>>, vector<8x8x32xf32>
    %45 = vector.shape_cast %44 : vector<8x8x32xf32> to vector<64x32xf32>
    %46 = arith.truncf %45 : vector<64x32xf32> to vector<64x32xbf16>
    %c0_55 = arith.constant 0 : index
    %c32_56 = arith.constant 32 : index
    %47 = vector.load %arg13[%c0_55, %c32_56] : memref<64x96xbf16, #tpu.memory_space<vmem>>, vector<64x32xbf16>
    tpu.vector_store %arg13[%c0_55, %c32_56], %46 {strides = array<i32>} : memref<64x96xbf16, #tpu.memory_space<vmem>>, vector<64x32xbf16>,
    %c0_57 = arith.constant 0 : index
    %c2_58 = arith.constant 2 : index
    %c0_59 = arith.constant 0 : index
    %48 = vector.load %arg12[%c0_57, %c2_58, %c0_59] : memref<8x10x32xf32, #tpu.memory_space<vmem>>, vector<8x8x32xf32>
    %49 = vector.shape_cast %48 : vector<8x8x32xf32> to vector<64x32xf32>
    %50 = arith.truncf %49 : vector<64x32xf32> to vector<64x32xbf16>
    %c0_60 = arith.constant 0 : index
    %c64 = arith.constant 64 : index
    %51 = vector.load %arg13[%c0_60, %c64] : memref<64x96xbf16, #tpu.memory_space<vmem>>, vector<64x32xbf16>
    tpu.vector_store %arg13[%c0_60, %c64], %50 {strides = array<i32>} : memref<64x96xbf16, #tpu.memory_space<vmem>>, vector<64x32xbf16>,
    %c0_61 = arith.constant 0 : index
    %c0_62 = arith.constant 0 : index
    %52 = vector.load %arg13[%c0_61, %c0_62] : memref<64x96xbf16, #tpu.memory_space<vmem>>, vector<64x96xbf16>
    %c0_63 = arith.constant 0 : index
    %c0_64 = arith.constant 0 : index
    %53 = vector.load %arg4[%c0_63, %c0_64] : memref<96x64xbf16, #tpu.memory_space<vmem>>, vector<96x64xbf16>
    %cst_65 = arith.constant dense<0.000000e+00> : vector<64x64xf32>
    %54 = tpu.matmul %52, %53, %cst_65 {dimension_numbers = #tpu.dot_dimension_numbers<[1], [0], [0], [1], [0, 0, 1, 1], [], []>} : vector<64x96xbf16>, vector<96x64xbf16>, vector<64x64xf32> -> vector<64x64xf32>
    %55 = vector.extract_strided_slice %54 {offsets = [0, 0], sizes = [64, 32], strides = [1, 1]} : vector<64x64xf32> to vector<64x32xf32>
    %56 = vector.extract_strided_slice %54 {offsets = [0, 32], sizes = [64, 32], strides = [1, 1]} : vector<64x64xf32> to vector<64x32xf32>
    %57 = arith.maximumf %55, %56 : vector<64x32xf32>
    %c0_66 = arith.constant 0 : index
    %c0_67 = arith.constant 0 : index
    %58 = vector.load %arg5[%c0_66, %c0_67] : memref<1x32xf32, #tpu.memory_space<vmem>>, vector<1x32xf32>
    %59 = vector.broadcast %58 : vector<1x32xf32> to vector<64x32xf32>
    %60 = arith.addf %57, %59 : vector<64x32xf32>
    %cst_68 = arith.constant 0.000000e+00 : f32
    %61 = vector.broadcast %cst_68 : f32 to vector<64x32xf32>
    %62 = arith.maximumf %60, %61 : vector<64x32xf32>
    %c0_69 = arith.constant 0 : index
    %c0_70 = arith.constant 0 : index
    %63 = vector.load %arg14[%c0_69, %c0_70] : memref<64x32xf32, #tpu.memory_space<vmem>>, vector<64x32xf32>
    tpu.vector_store %arg14[%c0_69, %c0_70], %62 {strides = array<i32>} : memref<64x32xf32, #tpu.memory_space<vmem>>, vector<64x32xf32>,
    %c0_71 = arith.constant 0 : index
    %c0_72 = arith.constant 0 : index
    %64 = vector.load %arg7[%c0_71, %c0_72] : memref<1x4xf32, #tpu.memory_space<vmem>>, vector<1x4xf32>
    %c0_73 = arith.constant 0 : index
    %c0_74 = arith.constant 0 : index
    %65 = tpu.strided_load %arg14[%c0_73, %c0_74] {strides = array<i32: 8, 1>} : memref<64x32xf32, #tpu.memory_space<vmem>>, vector<8x32xf32>
    %c1_75 = arith.constant 1 : index
    %c0_76 = arith.constant 0 : index
    %66 = tpu.strided_load %arg14[%c1_75, %c0_76] {strides = array<i32: 8, 1>} : memref<64x32xf32, #tpu.memory_space<vmem>>, vector<8x32xf32>
    %67 = arith.maximumf %65, %66 : vector<8x32xf32>
    %68 = arith.truncf %67 : vector<8x32xf32> to vector<8x32xbf16>
    %c0_77 = arith.constant 0 : index
    %c0_78 = arith.constant 0 : index
    %c0_79 = arith.constant 0 : index
    %69 = vector.load %arg6[%c0_77, %c0_78, %c0_79] : memref<4x32x4xbf16, #tpu.memory_space<vmem>>, vector<1x32x4xbf16>
    %70 = vector.shape_cast %69 : vector<1x32x4xbf16> to vector<32x4xbf16>
    %cst_80 = arith.constant dense<0.000000e+00> : vector<8x4xf32>
    %71 = tpu.matmul %68, %70, %cst_80 {dimension_numbers = #tpu.dot_dimension_numbers<[1], [0], [0], [1], [0, 0, 1, 1], [], []>} : vector<8x32xbf16>, vector<32x4xbf16>, vector<8x4xf32> -> vector<8x4xf32>
    %72 = vector.broadcast %64 : vector<1x4xf32> to vector<8x4xf32>
    %73 = arith.addf %72, %71 : vector<8x4xf32>
    %c2_81 = arith.constant 2 : index
    %c0_82 = arith.constant 0 : index
    %74 = tpu.strided_load %arg14[%c2_81, %c0_82] {strides = array<i32: 8, 1>} : memref<64x32xf32, #tpu.memory_space<vmem>>, vector<8x32xf32>
    %c3 = arith.constant 3 : index
    %c0_83 = arith.constant 0 : index
    %75 = tpu.strided_load %arg14[%c3, %c0_83] {strides = array<i32: 8, 1>} : memref<64x32xf32, #tpu.memory_space<vmem>>, vector<8x32xf32>
    %76 = arith.maximumf %74, %75 : vector<8x32xf32>
    %77 = arith.truncf %76 : vector<8x32xf32> to vector<8x32xbf16>
    %c1_84 = arith.constant 1 : index
    %c0_85 = arith.constant 0 : index
    %c0_86 = arith.constant 0 : index
    %78 = vector.load %arg6[%c1_84, %c0_85, %c0_86] : memref<4x32x4xbf16, #tpu.memory_space<vmem>>, vector<1x32x4xbf16>
    %79 = vector.shape_cast %78 : vector<1x32x4xbf16> to vector<32x4xbf16>
    %cst_87 = arith.constant dense<0.000000e+00> : vector<8x4xf32>
    %80 = tpu.matmul %77, %79, %cst_87 {dimension_numbers = #tpu.dot_dimension_numbers<[1], [0], [0], [1], [0, 0, 1, 1], [], []>} : vector<8x32xbf16>, vector<32x4xbf16>, vector<8x4xf32> -> vector<8x4xf32>
    %81 = arith.addf %73, %80 : vector<8x4xf32>
    %c4 = arith.constant 4 : index
    %c0_88 = arith.constant 0 : index
    %82 = tpu.strided_load %arg14[%c4, %c0_88] {strides = array<i32: 8, 1>} : memref<64x32xf32, #tpu.memory_space<vmem>>, vector<8x32xf32>
    %c5 = arith.constant 5 : index
    %c0_89 = arith.constant 0 : index
    %83 = tpu.strided_load %arg14[%c5, %c0_89] {strides = array<i32: 8, 1>} : memref<64x32xf32, #tpu.memory_space<vmem>>, vector<8x32xf32>
    %84 = arith.maximumf %82, %83 : vector<8x32xf32>
    %85 = arith.truncf %84 : vector<8x32xf32> to vector<8x32xbf16>
    %c2_90 = arith.constant 2 : index
    %c0_91 = arith.constant 0 : index
    %c0_92 = arith.constant 0 : index
    %86 = vector.load %arg6[%c2_90, %c0_91, %c0_92] : memref<4x32x4xbf16, #tpu.memory_space<vmem>>, vector<1x32x4xbf16>
    %87 = vector.shape_cast %86 : vector<1x32x4xbf16> to vector<32x4xbf16>
    %cst_93 = arith.constant dense<0.000000e+00> : vector<8x4xf32>
    %88 = tpu.matmul %85, %87, %cst_93 {dimension_numbers = #tpu.dot_dimension_numbers<[1], [0], [0], [1], [0, 0, 1, 1], [], []>} : vector<8x32xbf16>, vector<32x4xbf16>, vector<8x4xf32> -> vector<8x4xf32>
    %89 = arith.addf %81, %88 : vector<8x4xf32>
    %c6 = arith.constant 6 : index
    %c0_94 = arith.constant 0 : index
    %90 = tpu.strided_load %arg14[%c6, %c0_94] {strides = array<i32: 8, 1>} : memref<64x32xf32, #tpu.memory_space<vmem>>, vector<8x32xf32>
    %c7 = arith.constant 7 : index
    %c0_95 = arith.constant 0 : index
    %91 = tpu.strided_load %arg14[%c7, %c0_95] {strides = array<i32: 8, 1>} : memref<64x32xf32, #tpu.memory_space<vmem>>, vector<8x32xf32>
    %92 = arith.maximumf %90, %91 : vector<8x32xf32>
    %93 = arith.truncf %92 : vector<8x32xf32> to vector<8x32xbf16>
    %c3_96 = arith.constant 3 : index
    %c0_97 = arith.constant 0 : index
    %c0_98 = arith.constant 0 : index
    %94 = vector.load %arg6[%c3_96, %c0_97, %c0_98] : memref<4x32x4xbf16, #tpu.memory_space<vmem>>, vector<1x32x4xbf16>
    %95 = vector.shape_cast %94 : vector<1x32x4xbf16> to vector<32x4xbf16>
    %cst_99 = arith.constant dense<0.000000e+00> : vector<8x4xf32>
    %96 = tpu.matmul %93, %95, %cst_99 {dimension_numbers = #tpu.dot_dimension_numbers<[1], [0], [0], [1], [0, 0, 1, 1], [], []>} : vector<8x32xbf16>, vector<32x4xbf16>, vector<8x4xf32> -> vector<8x4xf32>
    %97 = arith.addf %89, %96 : vector<8x4xf32>
    %cst_100 = arith.constant dense<0xFF800000> : vector<8xf32>
    %98 = vector.multi_reduction <maximumf>, %97, %cst_100 [1] : vector<8x4xf32> to vector<8xf32>
    %99 = vector.shape_cast %98 : vector<8xf32> to vector<8x1xf32>
    %100 = vector.broadcast %99 : vector<8x1xf32> to vector<8x4xf32>
    %101 = arith.subf %97, %100 : vector<8x4xf32>
    %102 = math.exp %101 : vector<8x4xf32>
    %cst_101 = arith.constant dense<0.000000e+00> : vector<8xf32>
    %103 = vector.multi_reduction <add>, %102, %cst_101 [1] : vector<8x4xf32> to vector<8xf32>
    %104 = vector.shape_cast %103 : vector<8xf32> to vector<8x1xf32>
    %105 = vector.broadcast %104 : vector<8x1xf32> to vector<8x4xf32>
    %106 = arith.divf %102, %105 : vector<8x4xf32>
    %c0_102 = arith.constant 0 : index
    %c0_103 = arith.constant 0 : index
    %107 = vector.load %arg8[%c0_102, %c0_103] : memref<8x4xf32, #tpu.memory_space<vmem>>, vector<8x4xf32>
    tpu.vector_store %arg8[%c0_102, %c0_103], %106 {strides = array<i32>} : memref<8x4xf32, #tpu.memory_space<vmem>>, vector<8x4xf32>,
    return
  }
  func.func @transform_0(%arg0: i32) -> (i32, i32, i32, i32) {
    %c0_i32 = arith.constant 0 : i32
    %c0_i32_0 = arith.constant 0 : i32
    %c0_i32_1 = arith.constant 0 : i32
    %c0_i32_2 = arith.constant 0 : i32
    return %arg0, %c0_i32, %c0_i32_0, %c0_i32_1 : i32, i32, i32, i32
  }
  func.func @transform_1(%arg0: i32) -> (i32, i32) {
    %c0_i32 = arith.constant 0 : i32
    %c0_i32_0 = arith.constant 0 : i32
    %c0_i32_1 = arith.constant 0 : i32
    return %c0_i32, %c0_i32_0 : i32, i32
  }
  func.func @transform_2(%arg0: i32) -> (i32, i32) {
    %c0_i32 = arith.constant 0 : i32
    %c0_i32_0 = arith.constant 0 : i32
    %c0_i32_1 = arith.constant 0 : i32
    return %c0_i32, %c0_i32_0 : i32, i32
  }
  func.func @transform_3(%arg0: i32) -> (i32, i32) {
    %c0_i32 = arith.constant 0 : i32
    %c0_i32_0 = arith.constant 0 : i32
    %c0_i32_1 = arith.constant 0 : i32
    return %c0_i32, %c0_i32_0 : i32, i32
  }
  func.func @transform_4(%arg0: i32) -> (i32, i32) {
    %c0_i32 = arith.constant 0 : i32
    %c0_i32_0 = arith.constant 0 : i32
    %c0_i32_1 = arith.constant 0 : i32
    return %c0_i32, %c0_i32_0 : i32, i32
  }
  func.func @transform_5(%arg0: i32) -> (i32, i32, i32) {
    %c0_i32 = arith.constant 0 : i32
    %c0_i32_0 = arith.constant 0 : i32
    %c0_i32_1 = arith.constant 0 : i32
    %c0_i32_2 = arith.constant 0 : i32
    return %c0_i32, %c0_i32_0, %c0_i32_1 : i32, i32, i32
  }
  func.func @transform_6(%arg0: i32) -> (i32, i32) {
    %c0_i32 = arith.constant 0 : i32
    %c0_i32_0 = arith.constant 0 : i32
    %c0_i32_1 = arith.constant 0 : i32
    return %c0_i32, %c0_i32_0 : i32, i32
  }
  func.func @transform_7(%arg0: i32) -> (i32, i32) {
    %c0_i32 = arith.constant 0 : i32
    %c0_i32_0 = arith.constant 0 : i32
    return %arg0, %c0_i32 : i32, i32
  }
}

</mosaic_0001>

<llo_original>
// kernel: tpu_custom_call.1
$region0: #{tpu_custom_call.1}
  #allocation0 [shape = 'u32[]', space=smem, size = 0x4, offset = 0x4, fixed_abs, tag = 'smem constant byte address 0x4 - core index']
  #allocation1 [shape = 'u32[144,128]{1,0:T(1,128)}', space=vmem, size = 0x12000, scoped, tag = 'internal scratch']
  #allocation2 [shape = 'f32[8,18,16]{2,1,0:T(8,128)}', space=vmem, size = 0x18000, scoped, tag = 'scratch operand']
  #allocation3 [shape = 'bf16[128,48]{1,0:T(8,128)(2,1)}', space=vmem, size = 0x8000, scoped, tag = 'scratch operand']
  #allocation4 [shape = 'f32[128,32]{1,0:T(8,128)}', space=vmem, size = 0x10000, scoped, tag = 'scratch operand']
  #allocation5 [shape = 'f32[8,10,32]{2,1,0:T(8,128)}', space=vmem, size = 0x10000, scoped, tag = 'scratch operand']
  #allocation6 [shape = 'bf16[64,96]{1,0:T(8,128)(2,1)}', space=vmem, size = 0x4000, scoped, tag = 'scratch operand']
  #allocation7 [shape = 'f32[64,32]{1,0:T(8,128)}', space=vmem, size = 0x8000, scoped, tag = 'scratch operand']
  %s0 = inlined_call_operand.hbm [shape: f32[16,1,16,16], index: 0, kind: input, shape index: {}]
  %s1 = inlined_call_operand.vmem [shape: bf16[48,64], index: 1, kind: input, shape index: {}]
  %s2 = inlined_call_operand.vmem [shape: f32[1,32], index: 2, kind: input, shape index: {}]
  %s3 = inlined_call_operand.vmem [shape: bf16[96,64], index: 3, kind: input, shape index: {}]
  %s4 = inlined_call_operand.vmem [shape: f32[1,32], index: 4, kind: input, shape index: {}]
  %s5 = inlined_call_operand.vmem [shape: bf16[4,32,4], index: 5, kind: input, shape index: {}]
  %s6 = inlined_call_operand.vmem [shape: f32[1,4], index: 6, kind: input, shape index: {}]
  %s7 = inlined_call_operand.vmem [shape: f32[16,4], index: 7, kind: output, shape index: {}]
  %s8 = sld [smem:[#allocation0]]
  $region65: #{tpu_custom_call.1} parent=0
    _
  %s10 = ssub.s32 1, %s8
  %s11 = scalar_select 0, %s10, %s8
  $region1: #{tpu_custom_call.1} parent=0
    #allocation8 [shape = 'u8[131072]{0}', space=vmem, size = 0x20000, scoped, tag = 'input window, operand 0']
    #allocation9 [shape = 's32[2]{0}', space=sflag, size = 0x8, scoped, tag = 'scoped memory for tpu_custom_call.1']
    %12 = vsyncpa [#allocation9], 0
    %s13 = scalar_lea.sflag [#allocation9], 1
    %14 = vsyncpa %s13, 0
    loop: start=0, step=1, limit=4
    $region2: #{tpu_custom_call.1} parent=1 // loop_pre_header
      _
    $region3: #{tpu_custom_call.1} parent=1 // loop_header
      %s16 = sphi 0, %s20
      %p17 = scmp.ge.s32.totalorder %s16, 4
      %s26 = sphi 0, %s28
      %s29 = sphi 0, %s26
      %s30 = sphi 0, %s29
      %s46 = sphi 0, %s30
      %s50 = sphi 0, %s50
      %s52 = sphi 0, %s50
      %s53 = sphi 0, %s52
      %s67 = sphi 0, %s53
      %s71 = sphi 0, %s71
      %s73 = sphi 0, %s71
      %s74 = sphi 0, %s73
      %s88 = sphi 0, %s74
      %s92 = sphi 0, %s92
      %s94 = sphi 0, %s92
      %s95 = sphi 0, %s94
      %s109 = sphi 0, %s95
      %s113 = sphi 0, %s113
      %s115 = sphi 0, %s113
      %s116 = sphi 0, %s115
      %s130 = sphi 0, %s116
      %s134 = sphi 0, %s134
      %s136 = sphi 0, %s134
      %s137 = sphi 0, %s136
      %s151 = sphi 0, %s137
      %s155 = sphi 0, %s155
      %s157 = sphi 0, %s155
      %s158 = sphi 0, %s157
      %s172 = sphi 0, %s158
      %s178 = sphi 0, %s180
      %s181 = sphi 0, %s178
      %s182 = sphi 0, %s181
      %s198 = sphi 0, %s182
    $region4: #{tpu_custom_call.1} parent=1 // loop_header_branch
      %19 = sbr.rel (%p17) target = $region8
    $region5: #{tpu_custom_call.1} parent=1 // loop_body
      %s21 = ssub.s32 %s16, 1
      %s22 = ssub.s32 %s16, 2
      %s23 = sadd.s32 %s16, 1
      %s24 = ssub.s32 %s16, %s23
      %p25 = scmp.eq.s32.totalorder %s24, 0
      %s27 = sadd.s32 %s26, 1
      %s28 = scalar_select %p25, %s26, %s27
      %p31 = pneg %p25
      %p32 = scmp.eq.s32.totalorder %s16, 1
      %p33 = por %p31, %p32
      %p34 = scmp.ne.s32.totalorder %s26, %s29
      %p35 = scmp.eq.s32.totalorder %s16, 0
      %p36 = por %p34, %p35
      %p37 = scmp.ne.s32.totalorder %s26, %s29
      %p38 = scmp.eq.s32.totalorder %s21, 1
      %p39 = por %p37, %p38
      %p40 = scmp.ne.s32.totalorder %s29, %s30
      %p41 = scmp.eq.s32.totalorder %s21, 0
      %p42 = por %p40, %p41
      %p43 = scmp.ne.s32.totalorder %s29, %s30
      %p44 = scmp.eq.s32.totalorder %s22, 1
      %p45 = por %p43, %p44
      %p47 = scmp.ne.s32.totalorder %s30, %s46
      %p48 = scmp.eq.s32.totalorder %s22, 0
      %p49 = por %p47, %p48
      %s51 = sadd.s32 %s50, 1
      %p54 = scmp.eq.s32.totalorder %s16, 1
      %p55 = scmp.ne.s32.totalorder %s50, %s52
      %p56 = scmp.eq.s32.totalorder %s16, 0
      %p57 = por %p55, %p56
      %p58 = scmp.ne.s32.totalorder %s50, %s52
      %p59 = scmp.eq.s32.totalorder %s21, 1
      %p60 = por %p58, %p59
      %p61 = scmp.ne.s32.totalorder %s52, %s53
      %p62 = scmp.eq.s32.totalorder %s21, 0
      %p63 = por %p61, %p62
      %p64 = scmp.ne.s32.totalorder %s52, %s53
      %p65 = scmp.eq.s32.totalorder %s22, 1
      %p66 = por %p64, %p65
      %p68 = scmp.ne.s32.totalorder %s53, %s67
      %p69 = scmp.eq.s32.totalorder %s22, 0
      %p70 = por %p68, %p69
      %s72 = sadd.s32 %s71, 1
      %p75 = scmp.eq.s32.totalorder %s16, 1
      %p76 = scmp.ne.s32.totalorder %s71, %s73
      %p77 = scmp.eq.s32.totalorder %s16, 0
      %p78 = por %p76, %p77
      %p79 = scmp.ne.s32.totalorder %s71, %s73
      %p80 = scmp.eq.s32.totalorder %s21, 1
      %p81 = por %p79, %p80
      %p82 = scmp.ne.s32.totalorder %s73, %s74
      %p83 = scmp.eq.s32.totalorder %s21, 0
      %p84 = por %p82, %p83
      %p85 = scmp.ne.s32.totalorder %s73, %s74
      %p86 = scmp.eq.s32.totalorder %s22, 1
      %p87 = por %p85, %p86
      %p89 = scmp.ne.s32.totalorder %s74, %s88
      %p90 = scmp.eq.s32.totalorder %s22, 0
      %p91 = por %p89, %p90
      %s93 = sadd.s32 %s92, 1
      %p96 = scmp.eq.s32.totalorder %s16, 1
      %p97 = scmp.ne.s32.totalorder %s92, %s94
      %p98 = scmp.eq.s32.totalorder %s16, 0
      %p99 = por %p97, %p98
      %p100 = scmp.ne.s32.totalorder %s92, %s94
      %p101 = scmp.eq.s32.totalorder %s21, 1
      %p102 = por %p100, %p101
      %p103 = scmp.ne.s32.totalorder %s94, %s95
      %p104 = scmp.eq.s32.totalorder %s21, 0
      %p105 = por %p103, %p104
      %p106 = scmp.ne.s32.totalorder %s94, %s95
      %p107 = scmp.eq.s32.totalorder %s22, 1
      %p108 = por %p106, %p107
      %p110 = scmp.ne.s32.totalorder %s95, %s109
      %p111 = scmp.eq.s32.totalorder %s22, 0
      %p112 = por %p110, %p111
      %s114 = sadd.s32 %s113, 1
      %p117 = scmp.eq.s32.totalorder %s16, 1
      %p118 = scmp.ne.s32.totalorder %s113, %s115
      %p119 = scmp.eq.s32.totalorder %s16, 0
      %p120 = por %p118, %p119
      %p121 = scmp.ne.s32.totalorder %s113, %s115
      %p122 = scmp.eq.s32.totalorder %s21, 1
      %p123 = por %p121, %p122
      %p124 = scmp.ne.s32.totalorder %s115, %s116
      %p125 = scmp.eq.s32.totalorder %s21, 0
      %p126 = por %p124, %p125
      %p127 = scmp.ne.s32.totalorder %s115, %s116
      %p128 = scmp.eq.s32.totalorder %s22, 1
      %p129 = por %p127, %p128
      %p131 = scmp.ne.s32.totalorder %s116, %s130
      %p132 = scmp.eq.s32.totalorder %s22, 0
      %p133 = por %p131, %p132
      %s135 = sadd.s32 %s134, 1
      %p138 = scmp.eq.s32.totalorder %s16, 1
      %p139 = scmp.ne.s32.totalorder %s134, %s136
      %p140 = scmp.eq.s32.totalorder %s16, 0
      %p141 = por %p139, %p140
      %p142 = scmp.ne.s32.totalorder %s134, %s136
      %p143 = scmp.eq.s32.totalorder %s21, 1
      %p144 = por %p142, %p143
      %p145 = scmp.ne.s32.totalorder %s136, %s137
      %p146 = scmp.eq.s32.totalorder %s21, 0
      %p147 = por %p145, %p146
      %p148 = scmp.ne.s32.totalorder %s136, %s137
      %p149 = scmp.eq.s32.totalorder %s22, 1
      %p150 = por %p148, %p149
      %p152 = scmp.ne.s32.totalorder %s137, %s151
      %p153 = scmp.eq.s32.totalorder %s22, 0
      %p154 = por %p152, %p153
      %s156 = sadd.s32 %s155, 1
      %p159 = scmp.eq.s32.totalorder %s16, 1
      %p160 = scmp.ne.s32.totalorder %s155, %s157
      %p161 = scmp.eq.s32.totalorder %s16, 0
      %p162 = por %p160, %p161
      %p163 = scmp.ne.s32.totalorder %s155, %s157
      %p164 = scmp.eq.s32.totalorder %s21, 1
      %p165 = por %p163, %p164
      %p166 = scmp.ne.s32.totalorder %s157, %s158
      %p167 = scmp.eq.s32.totalorder %s21, 0
      %p168 = por %p166, %p167
      %p169 = scmp.ne.s32.totalorder %s157, %s158
      %p170 = scmp.eq.s32.totalorder %s22, 1
      %p171 = por %p169, %p170
      %p173 = scmp.ne.s32.totalorder %s158, %s172
      %p174 = scmp.eq.s32.totalorder %s22, 0
      %p175 = por %p173, %p174
      %s176 = ssub.s32 %s16, %s23
      %p177 = scmp.eq.s32.totalorder %s176, 0
      %s179 = sadd.s32 %s178, 1
      %s180 = scalar_select %p177, %s178, %s179
      %p183 = pneg %p177
      %p184 = scmp.eq.s32.totalorder %s16, 1
      %p185 = por %p183, %p184
      %p186 = scmp.ne.s32.totalorder %s178, %s181
      %p187 = scmp.eq.s32.totalorder %s16, 0
      %p188 = por %p186, %p187
      %p189 = scmp.ne.s32.totalorder %s178, %s181
      %p190 = scmp.eq.s32.totalorder %s21, 1
      %p191 = por %p189, %p190
      %p192 = scmp.ne.s32.totalorder %s181, %s182
      %p193 = scmp.eq.s32.totalorder %s21, 0
      %p194 = por %p192, %p193
      %p195 = scmp.ne.s32.totalorder %s181, %s182
      %p196 = scmp.eq.s32.totalorder %s22, 1
      %p197 = por %p195, %p196
      %p199 = scmp.ne.s32.totalorder %s182, %s198
      %p200 = scmp.eq.s32.totalorder %s22, 0
      %p201 = por %p199, %p200
      %p202 = scmp.le.s32.totalorder 1, %s16
      %p203 = scmp.lt.s32.totalorder %s16, 3
      %p204 = pnand %p202, %p203
      %p205 = pneg %p204
      // Predicated region
      $region9: #{tpu_custom_call.1} parent=5 // pred_check
        _
      $region10: #{tpu_custom_call.1} parent=5 // pred_check_branch
        %207 = sbr.rel (%p204) target = $region12
      $region11: #{tpu_custom_call.1} parent=5 // pred_region
        %s208 = ssub.s32 %s16, 1
        // Predicated region
        $region13: #{tpu_custom_call.1} parent=11 // pred_check
          %p209 = pneg %p63
        $region14: #{tpu_custom_call.1} parent=11 // pred_check_branch
          %211 = sbr.rel (%p209) target = $region16
        $region15: #{tpu_custom_call.1} parent=11 // pred_region
          _
        $region16: #{tpu_custom_call.1} parent=11 // pred_fallthru
          _
        // Predicated region
        $region17: #{tpu_custom_call.1} parent=11 // pred_check
          %p212 = pneg %p84
        $region18: #{tpu_custom_call.1} parent=11 // pred_check_branch
          %214 = sbr.rel (%p212) target = $region20
        $region19: #{tpu_custom_call.1} parent=11 // pred_region
          _
        $region20: #{tpu_custom_call.1} parent=11 // pred_fallthru
          _
        // Predicated region
        $region21: #{tpu_custom_call.1} parent=11 // pred_check
          %p215 = pneg %p105
        $region22: #{tpu_custom_call.1} parent=11 // pred_check_branch
          %217 = sbr.rel (%p215) target = $region24
        $region23: #{tpu_custom_call.1} parent=11 // pred_region
          _
        $region24: #{tpu_custom_call.1} parent=11 // pred_fallthru
          _
        // Predicated region
        $region25: #{tpu_custom_call.1} parent=11 // pred_check
          %p218 = pneg %p126
        $region26: #{tpu_custom_call.1} parent=11 // pred_check_branch
          %220 = sbr.rel (%p218) target = $region28
        $region27: #{tpu_custom_call.1} parent=11 // pred_region
          _
        $region28: #{tpu_custom_call.1} parent=11 // pred_fallthru
          _
        // Predicated region
        $region29: #{tpu_custom_call.1} parent=11 // pred_check
          %p221 = pneg %p147
        $region30: #{tpu_custom_call.1} parent=11 // pred_check_branch
          %223 = sbr.rel (%p221) target = $region32
        $region31: #{tpu_custom_call.1} parent=11 // pred_region
          _
        $region32: #{tpu_custom_call.1} parent=11 // pred_fallthru
          _
        // Predicated region
        $region33: #{tpu_custom_call.1} parent=11 // pred_check
          %p224 = pneg %p168
        $region34: #{tpu_custom_call.1} parent=11 // pred_check_branch
          %226 = sbr.rel (%p224) target = $region36
        $region35: #{tpu_custom_call.1} parent=11 // pred_region
          _
        $region36: #{tpu_custom_call.1} parent=11 // pred_fallthru
          _
      $region12: #{tpu_custom_call.1} parent=5 // pred_fallthru
        _
      %p227 = scmp.lt.s32.totalorder %s16, 2
      // Predicated region
      $region37: #{tpu_custom_call.1} parent=5 // pred_check
        %p228 = pneg %p227
      $region38: #{tpu_custom_call.1} parent=5 // pred_check_branch
        %230 = sbr.rel (%p228) target = $region40
      $region39: #{tpu_custom_call.1} parent=5 // pred_region
        // Predicated region
        $region41: #{tpu_custom_call.1} parent=39 // pred_check
          %p231 = pneg %p36
        $region42: #{tpu_custom_call.1} parent=39 // pred_check_branch
          %233 = sbr.rel (%p231) target = $region44
        $region43: #{tpu_custom_call.1} parent=39 // pred_region
          %s234 = sand.u32 %s26, 1
          %s235 = scalar_lea.sflag [#allocation9], %s234
          %s236 = sand.u32 %s26, 1
          %s237 = smul.addr %s236, 128
          %s238 = scalar_lea.vmem [#allocation8], %s237
          %s239 = smul.u32 8, %s16
          %s241 = ssub.s32 2048, 2048
          %242 = vsyncadd %s235, %s241
          %s243 = smul.addr %s239, 2
          %s244 = smul.addr %s243, 128
          %s245 = scalar_lea.hbm %s0, %s244
          %s246 = sshll.u32 %s238, 4
          %s247 = int_to_ptr.vmem [resolvable:$true] %s246
          %252 = dma.hbm_to_vmem [thread:$0]  %s245, 2048, %s247, %s235, 128, 128, 8
        $region44: #{tpu_custom_call.1} parent=39 // pred_fallthru
          _
      $region40: #{tpu_custom_call.1} parent=5 // pred_fallthru
        _
      %p253 = scmp.le.s32.totalorder 1, %s16
      %p254 = scmp.lt.s32.totalorder %s16, 3
      %p255 = pnand %p253, %p254
      %p256 = pneg %p255
      // Predicated region
      $region45: #{tpu_custom_call.1} parent=5 // pred_check
        _
      $region46: #{tpu_custom_call.1} parent=5 // pred_check_branch
        %258 = sbr.rel (%p255) target = $region48
      $region47: #{tpu_custom_call.1} parent=5 // pred_region
        %s259 = ssub.s32 %s16, 1
        %s260 = sand.u32 %s29, 1
        %s261 = scalar_lea.sflag [#allocation9], %s260
        %s262 = sand.u32 %s29, 1
        %s263 = smul.addr %s262, 128
        %s264 = scalar_lea.vmem [#allocation8], %s263
        // Predicated region
        $region49: #{tpu_custom_call.1} parent=47 // pred_check
          %p265 = pneg %p42
        $region50: #{tpu_custom_call.1} parent=47 // pred_check_branch
          %267 = sbr.rel (%p265) target = $region52
        $region51: #{tpu_custom_call.1} parent=47 // pred_region
          %268 = dma.done %s261, 2048
        $region52: #{tpu_custom_call.1} parent=47 // pred_fallthru
          _
        %s269 = sand.u32 %s29, 1
        %s270 = scalar_lea.sflag [#allocation9], %s269
        %s271 = sand.u32 %s29, 1
        %s272 = smul.addr %s271, 128
        %s273 = scalar_lea.vmem [#allocation8], %s272
        %p274 = pneg %p42
        %p275 = pneg %p39
        %p276 = pneg %p63
        %p277 = pneg %p60
        %p278 = pneg %p84
        %p279 = pneg %p81
        %p280 = pneg %p105
        %p281 = pneg %p102
        %p282 = pneg %p126
        %p283 = pneg %p123
        %p284 = pneg %p147
        %p285 = pneg %p144
        %p286 = pneg %p168
        %p287 = pneg %p165
        %p288 = pneg %p194
        %p289 = pneg %p191
        %p290 = scmp.lt.s32.totalorder %s21, 1
        %s291 = scalar_select %p290, %s21, 1
        %s292 = smul.addr %s291, 8
        %s293 = scalar_lea.vmem %s7, %s292
        %s294 = smul.u32 8, %s21
        %p295 = scmp.lt.s32.totalorder %s21, 1
        %s296 = scalar_select %p295, %s21, 1
        %s297 = smul.addr %s296, 8
        %s298 = scalar_lea.vmem %s7, %s297
        %v300 = vld [vmem:[%s264] sm:$0xff]
        %v301 = vld [vmem:[%s264 + $0x8] sm:$0xff]
        %v302 = vld [vmem:[%s264 + $0x10] sm:$0xff]
        %v303 = vld [vmem:[%s264 + $0x18] sm:$0xff]
        %v304 = vld [vmem:[%s264 + $0x20] sm:$0xff]
        %v305 = vld [vmem:[%s264 + $0x28] sm:$0xff]
        %v306 = vld [vmem:[%s264 + $0x30] sm:$0xff]
        %v307 = vld [vmem:[%s264 + $0x38] sm:$0xff]
        %v308 = vld [vmem:[%s264 + $0x40] sm:$0xff]
        %v309 = vld [vmem:[%s264 + $0x48] sm:$0xff]
        %v310 = vld [vmem:[%s264 + $0x50] sm:$0xff]
        %v311 = vld [vmem:[%s264 + $0x58] sm:$0xff]
        %v312 = vld [vmem:[%s264 + $0x60] sm:$0xff]
        %v313 = vld [vmem:[%s264 + $0x68] sm:$0xff]
        %v314 = vld [vmem:[%s264 + $0x70] sm:$0xff]
        %v315 = vld [vmem:[%s264 + $0x78] sm:$0xff]
        %vm316 = vcmask 130048
        %317 = vst.msk [vmem:[#allocation2 + $0x1] sm:$0xff] %vm316, %v300
        %318 = vst.msk [vmem:[#allocation2 + $0x9] sm:$0xff] %vm316, %v301
        %319 = vst.msk [vmem:[#allocation2 + $0x19] sm:$0xff] %vm316, %v302
        %320 = vst.msk [vmem:[#allocation2 + $0x21] sm:$0xff] %vm316, %v303
        %321 = vst.msk [vmem:[#allocation2 + $0x31] sm:$0xff] %vm316, %v304
        %322 = vst.msk [vmem:[#allocation2 + $0x39] sm:$0xff] %vm316, %v305
        %323 = vst.msk [vmem:[#allocation2 + $0x49] sm:$0xff] %vm316, %v306
        %324 = vst.msk [vmem:[#allocation2 + $0x51] sm:$0xff] %vm316, %v307
        %325 = vst.msk [vmem:[#allocation2 + $0x61] sm:$0xff] %vm316, %v308
        %326 = vst.msk [vmem:[#allocation2 + $0x69] sm:$0xff] %vm316, %v309
        %327 = vst.msk [vmem:[#allocation2 + $0x79] sm:$0xff] %vm316, %v310
        %328 = vst.msk [vmem:[#allocation2 + $0x81] sm:$0xff] %vm316, %v311
        %329 = vst.msk [vmem:[#allocation2 + $0x91] sm:$0xff] %vm316, %v312
        %330 = vst.msk [vmem:[#allocation2 + $0x99] sm:$0xff] %vm316, %v313
        %331 = vst.msk [vmem:[#allocation2 + $0xa9] sm:$0xff] %vm316, %v314
        %332 = vst.msk [vmem:[#allocation2 + $0xb1] sm:$0xff] %vm316, %v315
        %vm333 = vcmask 122880
        %334 = vst.msk [vmem:[#allocation2] sm:$0x1] %vm333, 0.0
        %335 = vst.msk [vmem:[#allocation2 + $0x18] sm:$0x1] %vm333, 0.0
        %336 = vst.msk [vmem:[#allocation2 + $0x30] sm:$0x1] %vm333, 0.0
        %337 = vst.msk [vmem:[#allocation2 + $0x48] sm:$0x1] %vm333, 0.0
        %338 = vst.msk [vmem:[#allocation2 + $0x60] sm:$0x1] %vm333, 0.0
        %339 = vst.msk [vmem:[#allocation2 + $0x78] sm:$0x1] %vm333, 0.0
        %340 = vst.msk [vmem:[#allocation2 + $0x90] sm:$0x1] %vm333, 0.0
        %341 = vst.msk [vmem:[#allocation2 + $0xa8] sm:$0x1] %vm333, 0.0
        %342 = vst.msk [vmem:[#allocation2 + $0x11] sm:$0x1] %vm333, 0.0
        %343 = vst.msk [vmem:[#allocation2 + $0x29] sm:$0x1] %vm333, 0.0
        %344 = vst.msk [vmem:[#allocation2 + $0x41] sm:$0x1] %vm333, 0.0
        %345 = vst.msk [vmem:[#allocation2 + $0x59] sm:$0x1] %vm333, 0.0
        %346 = vst.msk [vmem:[#allocation2 + $0x71] sm:$0x1] %vm333, 0.0
        %347 = vst.msk [vmem:[#allocation2 + $0x89] sm:$0x1] %vm333, 0.0
        %348 = vst.msk [vmem:[#allocation2 + $0xa1] sm:$0x1] %vm333, 0.0
        %349 = vst.msk [vmem:[#allocation2 + $0xb9] sm:$0x1] %vm333, 0.0
        %v350 = vld [vmem:[#allocation2] sm:$0xff]
        %v351 = vld [vmem:[#allocation2 + $0x8] sm:$0xff]
        %v352 = vld [vmem:[#allocation2 + $0x18] sm:$0xff]
        %v353 = vld [vmem:[#allocation2 + $0x20] sm:$0xff]
        %v354 = vld [vmem:[#allocation2 + $0x30] sm:$0xff]
        %v355 = vld [vmem:[#allocation2 + $0x38] sm:$0xff]
        %v356 = vld [vmem:[#allocation2 + $0x48] sm:$0xff]
        %v357 = vld [vmem:[#allocation2 + $0x50] sm:$0xff]
        %v358 = vld [vmem:[#allocation2 + $0x60] sm:$0xff]
        %v359 = vld [vmem:[#allocation2 + $0x68] sm:$0xff]
        %v360 = vld [vmem:[#allocation2 + $0x78] sm:$0xff]
        %v361 = vld [vmem:[#allocation2 + $0x80] sm:$0xff]
        %v362 = vld [vmem:[#allocation2 + $0x90] sm:$0xff]
        %v363 = vld [vmem:[#allocation2 + $0x98] sm:$0xff]
        %v364 = vld [vmem:[#allocation2 + $0xa8] sm:$0xff]
        %v365 = vld [vmem:[#allocation2 + $0xb0] sm:$0xff]
        %v366 = vpack.c.bf16 %v351, %v350
        %v367 = vpack.c.bf16 %v353, %v352
        %v368 = vpack.c.bf16 %v355, %v354
        %v369 = vpack.c.bf16 %v357, %v356
        %v370 = vpack.c.bf16 %v359, %v358
        %v371 = vpack.c.bf16 %v361, %v360
        %v372 = vpack.c.bf16 %v363, %v362
        %v373 = vpack.c.bf16 %v365, %v364
        %v382 = vunpack.c.l.b16 %v366
        %v383 = vunpack.c.h.b16 %v366
        %v384 = vunpack.c.l.b16 %v367
        %v385 = vunpack.c.h.b16 %v367
        %v386 = vunpack.c.l.b16 %v368
        %v387 = vunpack.c.h.b16 %v368
        %v388 = vunpack.c.l.b16 %v369
        %v389 = vunpack.c.h.b16 %v369
        %v390 = vunpack.c.l.b16 %v370
        %v391 = vunpack.c.h.b16 %v370
        %v392 = vunpack.c.l.b16 %v371
        %v393 = vunpack.c.h.b16 %v371
        %v394 = vunpack.c.l.b16 %v372
        %v395 = vunpack.c.h.b16 %v372
        %v396 = vunpack.c.l.b16 %v373
        %v397 = vunpack.c.h.b16 %v373
        %v398 = vpack.c.b16 %v382, %v382
        %v399 = vpack.c.b16 %v383, %v383
        %v400 = vpack.c.b16 %v384, %v384
        %v401 = vpack.c.b16 %v385, %v385
        %v402 = vpack.c.b16 %v386, %v386
        %v403 = vpack.c.b16 %v387, %v387
        %v404 = vpack.c.b16 %v388, %v388
        %v405 = vpack.c.b16 %v389, %v389
        %v406 = vpack.c.b16 %v390, %v390
        %v407 = vpack.c.b16 %v391, %v391
        %v408 = vpack.c.b16 %v392, %v392
        %v409 = vpack.c.b16 %v393, %v393
        %v410 = vpack.c.b16 %v394, %v394
        %v411 = vpack.c.b16 %v395, %v395
        %v412 = vpack.c.b16 %v396, %v396
        %v413 = vpack.c.b16 %v397, %v397
        %vm430 = vcmask 125952
        %431 = vst.msk [vmem:[#allocation3] sm:$0xf] %vm430, %v398
        %432 = vst.msk [vmem:[#allocation3 + $0x4] sm:$0xf] %vm430, %v399
        %433 = vst.msk [vmem:[#allocation3 + $0x8] sm:$0xf] %vm430, %v400
        %434 = vst.msk [vmem:[#allocation3 + $0xc] sm:$0xf] %vm430, %v401
        %435 = vst.msk [vmem:[#allocation3 + $0x10] sm:$0xf] %vm430, %v402
        %436 = vst.msk [vmem:[#allocation3 + $0x14] sm:$0xf] %vm430, %v403
        %437 = vst.msk [vmem:[#allocation3 + $0x18] sm:$0xf] %vm430, %v404
        %438 = vst.msk [vmem:[#allocation3 + $0x1c] sm:$0xf] %vm430, %v405
        %439 = vst.msk [vmem:[#allocation3 + $0x20] sm:$0xf] %vm430, %v406
        %440 = vst.msk [vmem:[#allocation3 + $0x24] sm:$0xf] %vm430, %v407
        %441 = vst.msk [vmem:[#allocation3 + $0x28] sm:$0xf] %vm430, %v408
        %442 = vst.msk [vmem:[#allocation3 + $0x2c] sm:$0xf] %vm430, %v409
        %443 = vst.msk [vmem:[#allocation3 + $0x30] sm:$0xf] %vm430, %v410
        %444 = vst.msk [vmem:[#allocation3 + $0x34] sm:$0xf] %vm430, %v411
        %445 = vst.msk [vmem:[#allocation3 + $0x38] sm:$0xf] %vm430, %v412
        %446 = vst.msk [vmem:[#allocation3 + $0x3c] sm:$0xf] %vm430, %v413
        %v447 = vld [vmem:[#allocation2 + $0x1] sm:$0xff]
        %v448 = vld [vmem:[#allocation2 + $0x9] sm:$0xff]
        %v449 = vld [vmem:[#allocation2 + $0x19] sm:$0xff]
        %v450 = vld [vmem:[#allocation2 + $0x21] sm:$0xff]
        %v451 = vld [vmem:[#allocation2 + $0x31] sm:$0xff]
        %v452 = vld [vmem:[#allocation2 + $0x39] sm:$0xff]
        %v453 = vld [vmem:[#allocation2 + $0x49] sm:$0xff]
        %v454 = vld [vmem:[#allocation2 + $0x51] sm:$0xff]
        %v455 = vld [vmem:[#allocation2 + $0x61] sm:$0xff]
        %v456 = vld [vmem:[#allocation2 + $0x69] sm:$0xff]
        %v457 = vld [vmem:[#allocation2 + $0x79] sm:$0xff]
        %v458 = vld [vmem:[#allocation2 + $0x81] sm:$0xff]
        %v459 = vld [vmem:[#allocation2 + $0x91] sm:$0xff]
        %v460 = vld [vmem:[#allocation2 + $0x99] sm:$0xff]
        %v461 = vld [vmem:[#allocation2 + $0xa9] sm:$0xff]
        %v462 = vld [vmem:[#allocation2 + $0xb1] sm:$0xff]
        %v463 = vpack.c.bf16 %v448, %v447
        %v464 = vpack.c.bf16 %v450, %v449
        %v465 = vpack.c.bf16 %v452, %v451
        %v466 = vpack.c.bf16 %v454, %v453
        %v467 = vpack.c.bf16 %v456, %v455
        %v468 = vpack.c.bf16 %v458, %v457
        %v469 = vpack.c.bf16 %v460, %v459
        %v470 = vpack.c.bf16 %v462, %v461
        %v479 = vunpack.c.l.b16 %v463
        %v480 = vunpack.c.h.b16 %v463
        %v481 = vunpack.c.l.b16 %v464
        %v482 = vunpack.c.h.b16 %v464
        %v483 = vunpack.c.l.b16 %v465
        %v484 = vunpack.c.h.b16 %v465
        %v485 = vunpack.c.l.b16 %v466
        %v486 = vunpack.c.h.b16 %v466
        %v487 = vunpack.c.l.b16 %v467
        %v488 = vunpack.c.h.b16 %v467
        %v489 = vunpack.c.l.b16 %v468
        %v490 = vunpack.c.h.b16 %v468
        %v491 = vunpack.c.l.b16 %v469
        %v492 = vunpack.c.h.b16 %v469
        %v493 = vunpack.c.l.b16 %v470
        %v494 = vunpack.c.h.b16 %v470
        %v495 = vpack.c.b16 %v479, %v479
        %v496 = vpack.c.b16 %v480, %v480
        %v497 = vpack.c.b16 %v481, %v481
        %v498 = vpack.c.b16 %v482, %v482
        %v499 = vpack.c.b16 %v483, %v483
        %v500 = vpack.c.b16 %v484, %v484
        %v501 = vpack.c.b16 %v485, %v485
        %v502 = vpack.c.b16 %v486, %v486
        %v503 = vpack.c.b16 %v487, %v487
        %v504 = vpack.c.b16 %v488, %v488
        %v505 = vpack.c.b16 %v489, %v489
        %v506 = vpack.c.b16 %v490, %v490
        %v507 = vpack.c.b16 %v491, %v491
        %v508 = vpack.c.b16 %v492, %v492
        %v509 = vpack.c.b16 %v493, %v493
        %v510 = vpack.c.b16 %v494, %v494
        %511 = vrot.lane.b32.xlu0 %v495, 16
        %v512 = vpop.permute.xlu0 %511
        %513 = vrot.lane.b32.xlu0 %v496, 16
        %v514 = vpop.permute.xlu0 %513
        %515 = vrot.lane.b32.xlu0 %v497, 16
        %v516 = vpop.permute.xlu0 %515
        %517 = vrot.lane.b32.xlu0 %v498, 16
        %v518 = vpop.permute.xlu0 %517
        %519 = vrot.lane.b32.xlu0 %v499, 16
        %v520 = vpop.permute.xlu0 %519
        %521 = vrot.lane.b32.xlu0 %v500, 16
        %v522 = vpop.permute.xlu0 %521
        %523 = vrot.lane.b32.xlu0 %v501, 16
        %v524 = vpop.permute.xlu0 %523
        %525 = vrot.lane.b32.xlu0 %v502, 16
        %v526 = vpop.permute.xlu0 %525
        %527 = vrot.lane.b32.xlu0 %v503, 16
        %v528 = vpop.permute.xlu0 %527
        %529 = vrot.lane.b32.xlu0 %v504, 16
        %v530 = vpop.permute.xlu0 %529
        %531 = vrot.lane.b32.xlu0 %v505, 16
        %v532 = vpop.permute.xlu0 %531
        %533 = vrot.lane.b32.xlu0 %v506, 16
        %v534 = vpop.permute.xlu0 %533
        %535 = vrot.lane.b32.xlu0 %v507, 16
        %v536 = vpop.permute.xlu0 %535
        %537 = vrot.lane.b32.xlu0 %v508, 16
        %v538 = vpop.permute.xlu0 %537
        %539 = vrot.lane.b32.xlu0 %v509, 16
        %v540 = vpop.permute.xlu0 %539
        %541 = vrot.lane.b32.xlu0 %v510, 16
        %v542 = vpop.permute.xlu0 %541
        %vm559 = vcmask 257152
        %560 = vst.msk [vmem:[#allocation3] sm:$0xf] %vm559, %v512
        %561 = vst.msk [vmem:[#allocation3 + $0x4] sm:$0xf] %vm559, %v514
        %562 = vst.msk [vmem:[#allocation3 + $0x8] sm:$0xf] %vm559, %v516
        %563 = vst.msk [vmem:[#allocation3 + $0xc] sm:$0xf] %vm559, %v518
        %564 = vst.msk [vmem:[#allocation3 + $0x10] sm:$0xf] %vm559, %v520
        %565 = vst.msk [vmem:[#allocation3 + $0x14] sm:$0xf] %vm559, %v522
        %566 = vst.msk [vmem:[#allocation3 + $0x18] sm:$0xf] %vm559, %v524
        %567 = vst.msk [vmem:[#allocation3 + $0x1c] sm:$0xf] %vm559, %v526
        %568 = vst.msk [vmem:[#allocation3 + $0x20] sm:$0xf] %vm559, %v528
        %569 = vst.msk [vmem:[#allocation3 + $0x24] sm:$0xf] %vm559, %v530
        %570 = vst.msk [vmem:[#allocation3 + $0x28] sm:$0xf] %vm559, %v532
        %571 = vst.msk [vmem:[#allocation3 + $0x2c] sm:$0xf] %vm559, %v534
        %572 = vst.msk [vmem:[#allocation3 + $0x30] sm:$0xf] %vm559, %v536
        %573 = vst.msk [vmem:[#allocation3 + $0x34] sm:$0xf] %vm559, %v538
        %574 = vst.msk [vmem:[#allocation3 + $0x38] sm:$0xf] %vm559, %v540
        %575 = vst.msk [vmem:[#allocation3 + $0x3c] sm:$0xf] %vm559, %v542
        %v576 = vld [vmem:[#allocation2 + $0x2] sm:$0xff]
        %v577 = vld [vmem:[#allocation2 + $0xa] sm:$0xff]
        %v578 = vld [vmem:[#allocation2 + $0x1a] sm:$0xff]
        %v579 = vld [vmem:[#allocation2 + $0x22] sm:$0xff]
        %v580 = vld [vmem:[#allocation2 + $0x32] sm:$0xff]
        %v581 = vld [vmem:[#allocation2 + $0x3a] sm:$0xff]
        %v582 = vld [vmem:[#allocation2 + $0x4a] sm:$0xff]
        %v583 = vld [vmem:[#allocation2 + $0x52] sm:$0xff]
        %v584 = vld [vmem:[#allocation2 + $0x62] sm:$0xff]
        %v585 = vld [vmem:[#allocation2 + $0x6a] sm:$0xff]
        %v586 = vld [vmem:[#allocation2 + $0x7a] sm:$0xff]
        %v587 = vld [vmem:[#allocation2 + $0x82] sm:$0xff]
        %v588 = vld [vmem:[#allocation2 + $0x92] sm:$0xff]
        %v589 = vld [vmem:[#allocation2 + $0x9a] sm:$0xff]
        %v590 = vld [vmem:[#allocation2 + $0xaa] sm:$0xff]
        %v591 = vld [vmem:[#allocation2 + $0xb2] sm:$0xff]
        %v592 = vpack.c.bf16 %v577, %v576
        %v593 = vpack.c.bf16 %v579, %v578
        %v594 = vpack.c.bf16 %v581, %v580
        %v595 = vpack.c.bf16 %v583, %v582
        %v596 = vpack.c.bf16 %v585, %v584
        %v597 = vpack.c.bf16 %v587, %v586
        %v598 = vpack.c.bf16 %v589, %v588
        %v599 = vpack.c.bf16 %v591, %v590
        %v608 = vunpack.c.l.b16 %v592
        %v609 = vunpack.c.h.b16 %v592
        %v610 = vunpack.c.l.b16 %v593
        %v611 = vunpack.c.h.b16 %v593
        %v612 = vunpack.c.l.b16 %v594
        %v613 = vunpack.c.h.b16 %v594
        %v614 = vunpack.c.l.b16 %v595
        %v615 = vunpack.c.h.b16 %v595
        %v616 = vunpack.c.l.b16 %v596
        %v617 = vunpack.c.h.b16 %v596
        %v618 = vunpack.c.l.b16 %v597
        %v619 = vunpack.c.h.b16 %v597
        %v620 = vunpack.c.l.b16 %v598
        %v621 = vunpack.c.h.b16 %v598
        %v622 = vunpack.c.l.b16 %v599
        %v623 = vunpack.c.h.b16 %v599
        %v624 = vpack.c.b16 %v608, %v608
        %v625 = vpack.c.b16 %v609, %v609
        %v626 = vpack.c.b16 %v610, %v610
        %v627 = vpack.c.b16 %v611, %v611
        %v628 = vpack.c.b16 %v612, %v612
        %v629 = vpack.c.b16 %v613, %v613
        %v630 = vpack.c.b16 %v614, %v614
        %v631 = vpack.c.b16 %v615, %v615
        %v632 = vpack.c.b16 %v616, %v616
        %v633 = vpack.c.b16 %v617, %v617
        %v634 = vpack.c.b16 %v618, %v618
        %v635 = vpack.c.b16 %v619, %v619
        %v636 = vpack.c.b16 %v620, %v620
        %v637 = vpack.c.b16 %v621, %v621
        %v638 = vpack.c.b16 %v622, %v622
        %v639 = vpack.c.b16 %v623, %v623
        %640 = vrot.lane.b32.xlu0 %v624, 32
        %v641 = vpop.permute.xlu0 %640
        %642 = vrot.lane.b32.xlu0 %v625, 32
        %v643 = vpop.permute.xlu0 %642
        %644 = vrot.lane.b32.xlu0 %v626, 32
        %v645 = vpop.permute.xlu0 %644
        %646 = vrot.lane.b32.xlu0 %v627, 32
        %v647 = vpop.permute.xlu0 %646
        %648 = vrot.lane.b32.xlu0 %v628, 32
        %v649 = vpop.permute.xlu0 %648
        %650 = vrot.lane.b32.xlu0 %v629, 32
        %v651 = vpop.permute.xlu0 %650
        %652 = vrot.lane.b32.xlu0 %v630, 32
        %v653 = vpop.permute.xlu0 %652
        %654 = vrot.lane.b32.xlu0 %v631, 32
        %v655 = vpop.permute.xlu0 %654
        %656 = vrot.lane.b32.xlu0 %v632, 32
        %v657 = vpop.permute.xlu0 %656
        %658 = vrot.lane.b32.xlu0 %v633, 32
        %v659 = vpop.permute.xlu0 %658
        %660 = vrot.lane.b32.xlu0 %v634, 32
        %v661 = vpop.permute.xlu0 %660
        %662 = vrot.lane.b32.xlu0 %v635, 32
        %v663 = vpop.permute.xlu0 %662
        %664 = vrot.lane.b32.xlu0 %v636, 32
        %v665 = vpop.permute.xlu0 %664
        %666 = vrot.lane.b32.xlu0 %v637, 32
        %v667 = vpop.permute.xlu0 %666
        %668 = vrot.lane.b32.xlu0 %v638, 32
        %v669 = vpop.permute.xlu0 %668
        %670 = vrot.lane.b32.xlu0 %v639, 32
        %v671 = vpop.permute.xlu0 %670
        %vm688 = vcmask 388352
        %689 = vst.msk [vmem:[#allocation3] sm:$0xf] %vm688, %v641
        %690 = vst.msk [vmem:[#allocation3 + $0x4] sm:$0xf] %vm688, %v643
        %691 = vst.msk [vmem:[#allocation3 + $0x8] sm:$0xf] %vm688, %v645
        %692 = vst.msk [vmem:[#allocation3 + $0xc] sm:$0xf] %vm688, %v647
        %693 = vst.msk [vmem:[#allocation3 + $0x10] sm:$0xf] %vm688, %v649
        %694 = vst.msk [vmem:[#allocation3 + $0x14] sm:$0xf] %vm688, %v651
        %695 = vst.msk [vmem:[#allocation3 + $0x18] sm:$0xf] %vm688, %v653
        %696 = vst.msk [vmem:[#allocation3 + $0x1c] sm:$0xf] %vm688, %v655
        %697 = vst.msk [vmem:[#allocation3 + $0x20] sm:$0xf] %vm688, %v657
        %698 = vst.msk [vmem:[#allocation3 + $0x24] sm:$0xf] %vm688, %v659
        %699 = vst.msk [vmem:[#allocation3 + $0x28] sm:$0xf] %vm688, %v661
        %700 = vst.msk [vmem:[#allocation3 + $0x2c] sm:$0xf] %vm688, %v663
        %701 = vst.msk [vmem:[#allocation3 + $0x30] sm:$0xf] %vm688, %v665
        %702 = vst.msk [vmem:[#allocation3 + $0x34] sm:$0xf] %vm688, %v667
        %703 = vst.msk [vmem:[#allocation3 + $0x38] sm:$0xf] %vm688, %v669
        %704 = vst.msk [vmem:[#allocation3 + $0x3c] sm:$0xf] %vm688, %v671
        %v705 = vld [vmem:[#allocation3] sm:$0xf]
        %v706 = vld [vmem:[#allocation3 + $0x4] sm:$0xf]
        %v707 = vld [vmem:[#allocation3 + $0x8] sm:$0xf]
        %v708 = vld [vmem:[#allocation3 + $0xc] sm:$0xf]
        %v709 = vld [vmem:[#allocation3 + $0x10] sm:$0xf]
        %v710 = vld [vmem:[#allocation3 + $0x14] sm:$0xf]
        %v711 = vld [vmem:[#allocation3 + $0x18] sm:$0xf]
        %v712 = vld [vmem:[#allocation3 + $0x1c] sm:$0xf]
        %v713 = vld [vmem:[#allocation3 + $0x20] sm:$0xf]
        %v714 = vld [vmem:[#allocation3 + $0x24] sm:$0xf]
        %v715 = vld [vmem:[#allocation3 + $0x28] sm:$0xf]
        %v716 = vld [vmem:[#allocation3 + $0x2c] sm:$0xf]
        %v717 = vld [vmem:[#allocation3 + $0x30] sm:$0xf]
        %v718 = vld [vmem:[#allocation3 + $0x34] sm:$0xf]
        %v719 = vld [vmem:[#allocation3 + $0x38] sm:$0xf]
        %v720 = vld [vmem:[#allocation3 + $0x3c] sm:$0xf]
        %v721 = vld [vmem:[%s1] sm:$0xf]
        %v722 = vld [vmem:[%s1 + $0x4] sm:$0xf]
        %v723 = vld [vmem:[%s1 + $0x8] sm:$0xf]
        %v724 = vld [vmem:[%s1 + $0xc] sm:$0xf]
        %v725 = vld [vmem:[%s1 + $0x10] sm:$0xf]
        %v726 = vld [vmem:[%s1 + $0x14] sm:$0xf]
        %v743 = vunpack.c.l.b16 %v705
        %v744 = vunpack.c.l.b16 %v706
        %v745 = vunpack.c.l.b16 %v707
        %v746 = vunpack.c.l.b16 %v708
        %v747 = vunpack.c.l.b16 %v709
        %v748 = vunpack.c.l.b16 %v710
        %v749 = vunpack.c.l.b16 %v711
        %v750 = vunpack.c.l.b16 %v712
        %v751 = vunpack.c.l.b16 %v713
        %v752 = vunpack.c.l.b16 %v714
        %v753 = vunpack.c.l.b16 %v715
        %v754 = vunpack.c.l.b16 %v716
        %v755 = vunpack.c.l.b16 %v717
        %v756 = vunpack.c.l.b16 %v718
        %v757 = vunpack.c.l.b16 %v719
        %v758 = vunpack.c.l.b16 %v720
        %v759 = vpack.c.b16 %v744, %v743
        %v760 = vpack.c.b16 %v746, %v745
        %v761 = vpack.c.b16 %v748, %v747
        %v762 = vpack.c.b16 %v750, %v749
        %v763 = vpack.c.b16 %v752, %v751
        %v764 = vpack.c.b16 %v754, %v753
        %v765 = vpack.c.b16 %v756, %v755
        %v766 = vpack.c.b16 %v758, %v757
        %v773 = vunpack.c.l.b16 %v721
        %v774 = vunpack.c.l.b16 %v722
        %v775 = vunpack.c.l.b16 %v723
        %v776 = vunpack.c.l.b16 %v724
        %v777 = vunpack.c.l.b16 %v725
        %v778 = vunpack.c.l.b16 %v726
        %v779 = vpack.c.b16 %v774, %v773
        %v780 = vpack.c.b16 %v776, %v775
        %v781 = vpack.c.b16 %v778, %v777
        %vm785 = vcmask 392192
        %v787 = vsel %vm785, %v759, 0
        %v790 = vsel %vm785, %v760, 0
        %v793 = vsel %vm785, %v761, 0
        %v796 = vsel %vm785, %v762, 0
        %v799 = vsel %vm785, %v763, 0
        %v802 = vsel %vm785, %v764, 0
        %v805 = vsel %vm785, %v765, 0
        %v808 = vsel %vm785, %v766, 0
        %810 = vmatprep.subr.bf16.mxu0 0
        %811 = vmatpush1.bf16.msra.mxu0 0
        %812 = vmatprep.subr.bf16.mxu0 0
        %813 = vmatpush1.bf16.msra.mxu0 0
        %814 = vmatprep.subr.bf16.mxu0 0
        %815 = vmatpush1.bf16.msra.mxu0 0
        %816 = vmatprep.subr.bf16.mxu0 0
        %817 = vmatpush1.bf16.msra.mxu0 0
        %818 = vmatprep.subr.bf16.mxu0 0
        %819 = vmatpush1.bf16.msra.mxu0 0
        %820 = vmatprep.subr.bf16.mxu0 0
        %821 = vmatpush1.bf16.msra.mxu0 %v781
        %822 = vmatprep.subr.bf16.mxu0 0
        %823 = vmatpush1.bf16.msra.mxu0 %v780
        %824 = vmatprep.subr.bf16.mxu0 0
        %825 = vmatpush1.bf16.msra.mxu0 %v779
        %826 = vmatprep.subr.bf16.mxu0 0
        %827 = vmatpush2.bf16.msra.mxu0 0
        %828 = vmatprep.subr.bf16.mxu0 0
        %829 = vmatpush2.bf16.msra.mxu0 0
        %830 = vmatprep.subr.bf16.mxu0 0
        %831 = vmatpush2.bf16.msra.mxu0 0
        %832 = vmatprep.subr.bf16.mxu0 0
        %833 = vmatpush2.bf16.msra.mxu0 0
        %834 = vmatprep.subr.bf16.mxu0 0
        %835 = vmatpush2.bf16.msra.mxu0 0
        %836 = vmatprep.subr.bf16.mxu0 0
        %837 = vmatpush2.bf16.msra.mxu0 0
        %838 = vmatprep.subr.bf16.mxu0 0
        %839 = vmatpush2.bf16.msra.mxu0 0
        %840 = vmatprep.subr.bf16.mxu0 0
        %841 = vmatpush2.bf16.msra.mxu0 0
        %842 = vmatprep.mubr.bf16.mxu0 0
        %843 = vmatmul.mubr.bf16.gmra.mxu0 %v787
        %v844 = vpop.f32.mrf.mxu0
        %v845 = vadd.f32 0.0, %v844
        %v846 = vpop.f32.mrf.mxu0
        %v847 = vpop.f32.mrf.mxu0
        %v848 = vadd.f32 0.0, %v847
        %v849 = vpop.f32.mrf.mxu0
        %850 = vmatprep.mubr.bf16.mxu0 0
        %851 = vmatmul.mubr.bf16.gmra.mxu0 %v790
        %v852 = vpop.f32.mrf.mxu0
        %v853 = vadd.f32 0.0, %v852
        %v854 = vpop.f32.mrf.mxu0
        %v855 = vpop.f32.mrf.mxu0
        %v856 = vadd.f32 0.0, %v855
        %v857 = vpop.f32.mrf.mxu0
        %858 = vmatprep.mubr.bf16.mxu0 0
        %859 = vmatmul.mubr.bf16.gmra.mxu0 %v793
        %v860 = vpop.f32.mrf.mxu0
        %v861 = vadd.f32 0.0, %v860
        %v862 = vpop.f32.mrf.mxu0
        %v863 = vpop.f32.mrf.mxu0
        %v864 = vadd.f32 0.0, %v863
        %v865 = vpop.f32.mrf.mxu0
        %866 = vmatprep.mubr.bf16.mxu0 0
        %867 = vmatmul.mubr.bf16.gmra.mxu0 %v796
        %v868 = vpop.f32.mrf.mxu0
        %v869 = vadd.f32 0.0, %v868
        %v870 = vpop.f32.mrf.mxu0
        %v871 = vpop.f32.mrf.mxu0
        %v872 = vadd.f32 0.0, %v871
        %v873 = vpop.f32.mrf.mxu0
        %874 = vmatprep.mubr.bf16.mxu0 0
        %875 = vmatmul.mubr.bf16.gmra.mxu0 %v799
        %v876 = vpop.f32.mrf.mxu0
        %v877 = vadd.f32 0.0, %v876
        %v878 = vpop.f32.mrf.mxu0
        %v879 = vpop.f32.mrf.mxu0
        %v880 = vadd.f32 0.0, %v879
        %v881 = vpop.f32.mrf.mxu0
        %882 = vmatprep.mubr.bf16.mxu0 0
        %883 = vmatmul.mubr.bf16.gmra.mxu0 %v802
        %v884 = vpop.f32.mrf.mxu0
        %v885 = vadd.f32 0.0, %v884
        %v886 = vpop.f32.mrf.mxu0
        %v887 = vpop.f32.mrf.mxu0
        %v888 = vadd.f32 0.0, %v887
        %v889 = vpop.f32.mrf.mxu0
        %890 = vmatprep.mubr.bf16.mxu0 0
        %891 = vmatmul.mubr.bf16.gmra.mxu0 %v805
        %v892 = vpop.f32.mrf.mxu0
        %v893 = vadd.f32 0.0, %v892
        %v894 = vpop.f32.mrf.mxu0
        %v895 = vpop.f32.mrf.mxu0
        %v896 = vadd.f32 0.0, %v895
        %v897 = vpop.f32.mrf.mxu0
        %898 = vmatprep.mubr.bf16.mxu0 0
        %899 = vmatmul.mubr.bf16.gmra.mxu0 %v808
        %v900 = vpop.f32.mrf.mxu0
        %v901 = vadd.f32 0.0, %v900
        %v902 = vpop.f32.mrf.mxu0
        %v903 = vpop.f32.mrf.mxu0
        %v904 = vadd.f32 0.0, %v903
        %v905 = vpop.f32.mrf.mxu0
        %906 = vdwg.mxu0
        %923 = vrot.lane.b32.xlu0 %v845, 96
        %v924 = vpop.permute.xlu0 %923
        %925 = vrot.lane.b32.xlu0 %v848, 96
        %v926 = vpop.permute.xlu0 %925
        %927 = vrot.lane.b32.xlu0 %v853, 96
        %v928 = vpop.permute.xlu0 %927
        %929 = vrot.lane.b32.xlu0 %v856, 96
        %v930 = vpop.permute.xlu0 %929
        %931 = vrot.lane.b32.xlu0 %v861, 96
        %v932 = vpop.permute.xlu0 %931
        %933 = vrot.lane.b32.xlu0 %v864, 96
        %v934 = vpop.permute.xlu0 %933
        %935 = vrot.lane.b32.xlu0 %v869, 96
        %v936 = vpop.permute.xlu0 %935
        %937 = vrot.lane.b32.xlu0 %v872, 96
        %v938 = vpop.permute.xlu0 %937
        %939 = vrot.lane.b32.xlu0 %v877, 96
        %v940 = vpop.permute.xlu0 %939
        %941 = vrot.lane.b32.xlu0 %v880, 96
        %v942 = vpop.permute.xlu0 %941
        %943 = vrot.lane.b32.xlu0 %v885, 96
        %v944 = vpop.permute.xlu0 %943
        %945 = vrot.lane.b32.xlu0 %v888, 96
        %v946 = vpop.permute.xlu0 %945
        %947 = vrot.lane.b32.xlu0 %v893, 96
        %v948 = vpop.permute.xlu0 %947
        %949 = vrot.lane.b32.xlu0 %v896, 96
        %v950 = vpop.permute.xlu0 %949
        %951 = vrot.lane.b32.xlu0 %v901, 96
        %v952 = vpop.permute.xlu0 %951
        %953 = vrot.lane.b32.xlu0 %v904, 96
        %v954 = vpop.permute.xlu0 %953
        %v971 = vmax.f32 %v845, %v924
        %v972 = vmax.f32 %v848, %v926
        %v973 = vmax.f32 %v853, %v928
        %v974 = vmax.f32 %v856, %v930
        %v975 = vmax.f32 %v861, %v932
        %v976 = vmax.f32 %v864, %v934
        %v977 = vmax.f32 %v869, %v936
        %v978 = vmax.f32 %v872, %v938
        %v979 = vmax.f32 %v877, %v940
        %v980 = vmax.f32 %v880, %v942
        %v981 = vmax.f32 %v885, %v944
        %v982 = vmax.f32 %v888, %v946
        %v983 = vmax.f32 %v893, %v948
        %v984 = vmax.f32 %v896, %v950
        %v985 = vmax.f32 %v901, %v952
        %v986 = vmax.f32 %v904, %v954
        %v987 = vld [vmem:[%s2] sm:$0x1]
        %v989 = vlaneseq
        %v990 = vshrl.u32 %v989, 7
        %v991 = vsub.s32 0, %v990
        %v992 = vrot.slane %v987, %v991
        %v994 = vadd.f32 %v971, %v992
        %v995 = vadd.f32 %v972, %v992
        %v996 = vadd.f32 %v973, %v992
        %v997 = vadd.f32 %v974, %v992
        %v998 = vadd.f32 %v975, %v992
        %v999 = vadd.f32 %v976, %v992
        %v1000 = vadd.f32 %v977, %v992
        %v1001 = vadd.f32 %v978, %v992
        %v1002 = vadd.f32 %v979, %v992
        %v1003 = vadd.f32 %v980, %v992
        %v1004 = vadd.f32 %v981, %v992
        %v1005 = vadd.f32 %v982, %v992
        %v1006 = vadd.f32 %v983, %v992
        %v1007 = vadd.f32 %v984, %v992
        %v1008 = vadd.f32 %v985, %v992
        %v1009 = vadd.f32 %v986, %v992
        %v1010 = vmax.f32 %v994, 0.0
        %v1011 = vmax.f32 %v995, 0.0
        %v1012 = vmax.f32 %v996, 0.0
        %v1013 = vmax.f32 %v997, 0.0
        %v1014 = vmax.f32 %v998, 0.0
        %v1015 = vmax.f32 %v999, 0.0
        %v1016 = vmax.f32 %v1000, 0.0
        %v1017 = vmax.f32 %v1001, 0.0
        %v1018 = vmax.f32 %v1002, 0.0
        %v1019 = vmax.f32 %v1003, 0.0
        %v1020 = vmax.f32 %v1004, 0.0
        %v1021 = vmax.f32 %v1005, 0.0
        %v1022 = vmax.f32 %v1006, 0.0
        %v1023 = vmax.f32 %v1007, 0.0
        %v1024 = vmax.f32 %v1008, 0.0
        %v1025 = vmax.f32 %v1009, 0.0
        %vm1026 = vcmask 261120
        %1027 = vst.msk [vmem:[#allocation4] sm:$0xff] %vm1026, %v1010
        %1028 = vst.msk [vmem:[#allocation4 + $0x8] sm:$0xff] %vm1026, %v1011
        %1029 = vst.msk [vmem:[#allocation4 + $0x10] sm:$0xff] %vm1026, %v1012
        %1030 = vst.msk [vmem:[#allocation4 + $0x18] sm:$0xff] %vm1026, %v1013
        %1031 = vst.msk [vmem:[#allocation4 + $0x20] sm:$0xff] %vm1026, %v1014
        %1032 = vst.msk [vmem:[#allocation4 + $0x28] sm:$0xff] %vm1026, %v1015
        %1033 = vst.msk [vmem:[#allocation4 + $0x30] sm:$0xff] %vm1026, %v1016
        %1034 = vst.msk [vmem:[#allocation4 + $0x38] sm:$0xff] %vm1026, %v1017
        %1035 = vst.msk [vmem:[#allocation4 + $0x40] sm:$0xff] %vm1026, %v1018
        %1036 = vst.msk [vmem:[#allocation4 + $0x48] sm:$0xff] %vm1026, %v1019
        %1037 = vst.msk [vmem:[#allocation4 + $0x50] sm:$0xff] %vm1026, %v1020
        %1038 = vst.msk [vmem:[#allocation4 + $0x58] sm:$0xff] %vm1026, %v1021
        %1039 = vst.msk [vmem:[#allocation4 + $0x60] sm:$0xff] %vm1026, %v1022
        %1040 = vst.msk [vmem:[#allocation4 + $0x68] sm:$0xff] %vm1026, %v1023
        %1041 = vst.msk [vmem:[#allocation4 + $0x70] sm:$0xff] %vm1026, %v1024
        %1042 = vst.msk [vmem:[#allocation4 + $0x78] sm:$0xff] %vm1026, %v1025
        %v1043 = vld [vmem:[#allocation4] ss:$2 sm:$0xff]
        %s1044 = scalar_lea.vmem [#allocation4], 16
        %v1045 = vld [vmem:[%s1044] ss:$2 sm:$0xff]
        %s1046 = scalar_lea.vmem [#allocation4], 32
        %v1047 = vld [vmem:[%s1046] ss:$2 sm:$0xff]
        %s1048 = scalar_lea.vmem [#allocation4], 48
        %v1049 = vld [vmem:[%s1048] ss:$2 sm:$0xff]
        %s1050 = scalar_lea.vmem [#allocation4], 64
        %v1051 = vld [vmem:[%s1050] ss:$2 sm:$0xff]
        %s1052 = scalar_lea.vmem [#allocation4], 80
        %v1053 = vld [vmem:[%s1052] ss:$2 sm:$0xff]
        %s1054 = scalar_lea.vmem [#allocation4], 96
        %v1055 = vld [vmem:[%s1054] ss:$2 sm:$0xff]
        %s1056 = scalar_lea.vmem [#allocation4], 112
        %v1057 = vld [vmem:[%s1056] ss:$2 sm:$0xff]
        %s1058 = scalar_lea.vmem [#allocation4], 1
        %v1059 = vld [vmem:[%s1058] ss:$2 sm:$0xff]
        %s1060 = scalar_lea.vmem [#allocation4], 17
        %v1061 = vld [vmem:[%s1060] ss:$2 sm:$0xff]
        %s1062 = scalar_lea.vmem [#allocation4], 33
        %v1063 = vld [vmem:[%s1062] ss:$2 sm:$0xff]
        %s1064 = scalar_lea.vmem [#allocation4], 49
        %v1065 = vld [vmem:[%s1064] ss:$2 sm:$0xff]
        %s1066 = scalar_lea.vmem [#allocation4], 65
        %v1067 = vld [vmem:[%s1066] ss:$2 sm:$0xff]
        %s1068 = scalar_lea.vmem [#allocation4], 81
        %v1069 = vld [vmem:[%s1068] ss:$2 sm:$0xff]
        %s1070 = scalar_lea.vmem [#allocation4], 97
        %v1071 = vld [vmem:[%s1070] ss:$2 sm:$0xff]
        %s1072 = scalar_lea.vmem [#allocation4], 113
        %v1073 = vld [vmem:[%s1072] ss:$2 sm:$0xff]
        %v1074 = vmax.f32 %v1043, %v1059
        %v1075 = vmax.f32 %v1045, %v1061
        %v1076 = vmax.f32 %v1047, %v1063
        %v1077 = vmax.f32 %v1049, %v1065
        %v1078 = vmax.f32 %v1051, %v1067
        %v1079 = vmax.f32 %v1053, %v1069
        %v1080 = vmax.f32 %v1055, %v1071
        %v1081 = vmax.f32 %v1057, %v1073
        %1082 = vst.msk [vmem:[#allocation5 + $0x1] sm:$0xff] %vm1026, %v1074
        %1083 = vst.msk [vmem:[#allocation5 + $0x11] sm:$0xff] %vm1026, %v1075
        %1084 = vst.msk [vmem:[#allocation5 + $0x21] sm:$0xff] %vm1026, %v1076
        %1085 = vst.msk [vmem:[#allocation5 + $0x31] sm:$0xff] %vm1026, %v1077
        %1086 = vst.msk [vmem:[#allocation5 + $0x41] sm:$0xff] %vm1026, %v1078
        %1087 = vst.msk [vmem:[#allocation5 + $0x51] sm:$0xff] %vm1026, %v1079
        %1088 = vst.msk [vmem:[#allocation5 + $0x61] sm:$0xff] %vm1026, %v1080
        %1089 = vst.msk [vmem:[#allocation5 + $0x71] sm:$0xff] %vm1026, %v1081
        %vm1090 = vcmask 253952
        %1091 = vst.msk [vmem:[#allocation5] sm:$0x1] %vm1090, 0.0
        %1092 = vst.msk [vmem:[#allocation5 + $0x10] sm:$0x1] %vm1090, 0.0
        %1093 = vst.msk [vmem:[#allocation5 + $0x20] sm:$0x1] %vm1090, 0.0
        %1094 = vst.msk [vmem:[#allocation5 + $0x30] sm:$0x1] %vm1090, 0.0
        %1095 = vst.msk [vmem:[#allocation5 + $0x40] sm:$0x1] %vm1090, 0.0
        %1096 = vst.msk [vmem:[#allocation5 + $0x50] sm:$0x1] %vm1090, 0.0
        %1097 = vst.msk [vmem:[#allocation5 + $0x60] sm:$0x1] %vm1090, 0.0
        %1098 = vst.msk [vmem:[#allocation5 + $0x70] sm:$0x1] %vm1090, 0.0
        %1099 = vst.msk [vmem:[#allocation5 + $0x9] sm:$0x1] %vm1090, 0.0
        %1100 = vst.msk [vmem:[#allocation5 + $0x19] sm:$0x1] %vm1090, 0.0
        %1101 = vst.msk [vmem:[#allocation5 + $0x29] sm:$0x1] %vm1090, 0.0
        %1102 = vst.msk [vmem:[#allocation5 + $0x39] sm:$0x1] %vm1090, 0.0
        %1103 = vst.msk [vmem:[#allocation5 + $0x49] sm:$0x1] %vm1090, 0.0
        %1104 = vst.msk [vmem:[#allocation5 + $0x59] sm:$0x1] %vm1090, 0.0
        %1105 = vst.msk [vmem:[#allocation5 + $0x69] sm:$0x1] %vm1090, 0.0
        %1106 = vst.msk [vmem:[#allocation5 + $0x79] sm:$0x1] %vm1090, 0.0
        %v1107 = vld [vmem:[#allocation5] sm:$0xff]
        %v1108 = vld [vmem:[#allocation5 + $0x10] sm:$0xff]
        %v1109 = vld [vmem:[#allocation5 + $0x20] sm:$0xff]
        %v1110 = vld [vmem:[#allocation5 + $0x30] sm:$0xff]
        %v1111 = vld [vmem:[#allocation5 + $0x40] sm:$0xff]
        %v1112 = vld [vmem:[#allocation5 + $0x50] sm:$0xff]
        %v1113 = vld [vmem:[#allocation5 + $0x60] sm:$0xff]
        %v1114 = vld [vmem:[#allocation5 + $0x70] sm:$0xff]
        %v1115 = vpack.c.bf16 %v1108, %v1107
        %v1116 = vpack.c.bf16 %v1110, %v1109
        %v1117 = vpack.c.bf16 %v1112, %v1111
        %v1118 = vpack.c.bf16 %v1114, %v1113
        %v1123 = vunpack.c.l.b16 %v1115
        %v1124 = vunpack.c.h.b16 %v1115
        %v1125 = vunpack.c.l.b16 %v1116
        %v1126 = vunpack.c.h.b16 %v1116
        %v1127 = vunpack.c.l.b16 %v1117
        %v1128 = vunpack.c.h.b16 %v1117
        %v1129 = vunpack.c.l.b16 %v1118
        %v1130 = vunpack.c.h.b16 %v1118
        %v1131 = vpack.c.b16 %v1123, %v1123
        %v1132 = vpack.c.b16 %v1124, %v1124
        %v1133 = vpack.c.b16 %v1125, %v1125
        %v1134 = vpack.c.b16 %v1126, %v1126
        %v1135 = vpack.c.b16 %v1127, %v1127
        %v1136 = vpack.c.b16 %v1128, %v1128
        %v1137 = vpack.c.b16 %v1129, %v1129
        %v1138 = vpack.c.b16 %v1130, %v1130
        %vm1147 = vcmask 257024
        %1148 = vst.msk [vmem:[#allocation6] sm:$0xf] %vm1147, %v1131
        %1149 = vst.msk [vmem:[#allocation6 + $0x4] sm:$0xf] %vm1147, %v1132
        %1150 = vst.msk [vmem:[#allocation6 + $0x8] sm:$0xf] %vm1147, %v1133
        %1151 = vst.msk [vmem:[#allocation6 + $0xc] sm:$0xf] %vm1147, %v1134
        %1152 = vst.msk [vmem:[#allocation6 + $0x10] sm:$0xf] %vm1147, %v1135
        %1153 = vst.msk [vmem:[#allocation6 + $0x14] sm:$0xf] %vm1147, %v1136
        %1154 = vst.msk [vmem:[#allocation6 + $0x18] sm:$0xf] %vm1147, %v1137
        %1155 = vst.msk [vmem:[#allocation6 + $0x1c] sm:$0xf] %vm1147, %v1138
        %v1156 = vld [vmem:[#allocation5 + $0x1] sm:$0xff]
        %v1157 = vld [vmem:[#allocation5 + $0x11] sm:$0xff]
        %v1158 = vld [vmem:[#allocation5 + $0x21] sm:$0xff]
        %v1159 = vld [vmem:[#allocation5 + $0x31] sm:$0xff]
        %v1160 = vld [vmem:[#allocation5 + $0x41] sm:$0xff]
        %v1161 = vld [vmem:[#allocation5 + $0x51] sm:$0xff]
        %v1162 = vld [vmem:[#allocation5 + $0x61] sm:$0xff]
        %v1163 = vld [vmem:[#allocation5 + $0x71] sm:$0xff]
        %v1164 = vpack.c.bf16 %v1157, %v1156
        %v1165 = vpack.c.bf16 %v1159, %v1158
        %v1166 = vpack.c.bf16 %v1161, %v1160
        %v1167 = vpack.c.bf16 %v1163, %v1162
        %v1172 = vunpack.c.l.b16 %v1164
        %v1173 = vunpack.c.h.b16 %v1164
        %v1174 = vunpack.c.l.b16 %v1165
        %v1175 = vunpack.c.h.b16 %v1165
        %v1176 = vunpack.c.l.b16 %v1166
        %v1177 = vunpack.c.h.b16 %v1166
        %v1178 = vunpack.c.l.b16 %v1167
        %v1179 = vunpack.c.h.b16 %v1167
        %v1180 = vpack.c.b16 %v1172, %v1172
        %v1181 = vpack.c.b16 %v1173, %v1173
        %v1182 = vpack.c.b16 %v1174, %v1174
        %v1183 = vpack.c.b16 %v1175, %v1175
        %v1184 = vpack.c.b16 %v1176, %v1176
        %v1185 = vpack.c.b16 %v1177, %v1177
        %v1186 = vpack.c.b16 %v1178, %v1178
        %v1187 = vpack.c.b16 %v1179, %v1179
        %1188 = vrot.lane.b32.xlu0 %v1180, 32
        %v1189 = vpop.permute.xlu0 %1188
        %1190 = vrot.lane.b32.xlu0 %v1181, 32
        %v1191 = vpop.permute.xlu0 %1190
        %1192 = vrot.lane.b32.xlu0 %v1182, 32
        %v1193 = vpop.permute.xlu0 %1192
        %1194 = vrot.lane.b32.xlu0 %v1183, 32
        %v1195 = vpop.permute.xlu0 %1194
        %1196 = vrot.lane.b32.xlu0 %v1184, 32
        %v1197 = vpop.permute.xlu0 %1196
        %1198 = vrot.lane.b32.xlu0 %v1185, 32
        %v1199 = vpop.permute.xlu0 %1198
        %1200 = vrot.lane.b32.xlu0 %v1186, 32
        %v1201 = vpop.permute.xlu0 %1200
        %1202 = vrot.lane.b32.xlu0 %v1187, 32
        %v1203 = vpop.permute.xlu0 %1202
        %vm1212 = vcmask 519424
        %1213 = vst.msk [vmem:[#allocation6] sm:$0xf] %vm1212, %v1189
        %1214 = vst.msk [vmem:[#allocation6 + $0x4] sm:$0xf] %vm1212, %v1191
        %1215 = vst.msk [vmem:[#allocation6 + $0x8] sm:$0xf] %vm1212, %v1193
        %1216 = vst.msk [vmem:[#allocation6 + $0xc] sm:$0xf] %vm1212, %v1195
        %1217 = vst.msk [vmem:[#allocation6 + $0x10] sm:$0xf] %vm1212, %v1197
        %1218 = vst.msk [vmem:[#allocation6 + $0x14] sm:$0xf] %vm1212, %v1199
        %1219 = vst.msk [vmem:[#allocation6 + $0x18] sm:$0xf] %vm1212, %v1201
        %1220 = vst.msk [vmem:[#allocation6 + $0x1c] sm:$0xf] %vm1212, %v1203
        %v1221 = vld [vmem:[#allocation5 + $0x2] sm:$0xff]
        %v1222 = vld [vmem:[#allocation5 + $0x12] sm:$0xff]
        %v1223 = vld [vmem:[#allocation5 + $0x22] sm:$0xff]
        %v1224 = vld [vmem:[#allocation5 + $0x32] sm:$0xff]
        %v1225 = vld [vmem:[#allocation5 + $0x42] sm:$0xff]
        %v1226 = vld [vmem:[#allocation5 + $0x52] sm:$0xff]
        %v1227 = vld [vmem:[#allocation5 + $0x62] sm:$0xff]
        %v1228 = vld [vmem:[#allocation5 + $0x72] sm:$0xff]
        %v1229 = vpack.c.bf16 %v1222, %v1221
        %v1230 = vpack.c.bf16 %v1224, %v1223
        %v1231 = vpack.c.bf16 %v1226, %v1225
        %v1232 = vpack.c.bf16 %v1228, %v1227
        %v1237 = vunpack.c.l.b16 %v1229
        %v1238 = vunpack.c.h.b16 %v1229
        %v1239 = vunpack.c.l.b16 %v1230
        %v1240 = vunpack.c.h.b16 %v1230
        %v1241 = vunpack.c.l.b16 %v1231
        %v1242 = vunpack.c.h.b16 %v1231
        %v1243 = vunpack.c.l.b16 %v1232
        %v1244 = vunpack.c.h.b16 %v1232
        %v1245 = vpack.c.b16 %v1237, %v1237
        %v1246 = vpack.c.b16 %v1238, %v1238
        %v1247 = vpack.c.b16 %v1239, %v1239
        %v1248 = vpack.c.b16 %v1240, %v1240
        %v1249 = vpack.c.b16 %v1241, %v1241
        %v1250 = vpack.c.b16 %v1242, %v1242
        %v1251 = vpack.c.b16 %v1243, %v1243
        %v1252 = vpack.c.b16 %v1244, %v1244
        %1253 = vrot.lane.b32.xlu0 %v1245, 64
        %v1254 = vpop.permute.xlu0 %1253
        %1255 = vrot.lane.b32.xlu0 %v1246, 64
        %v1256 = vpop.permute.xlu0 %1255
        %1257 = vrot.lane.b32.xlu0 %v1247, 64
        %v1258 = vpop.permute.xlu0 %1257
        %1259 = vrot.lane.b32.xlu0 %v1248, 64
        %v1260 = vpop.permute.xlu0 %1259
        %1261 = vrot.lane.b32.xlu0 %v1249, 64
        %v1262 = vpop.permute.xlu0 %1261
        %1263 = vrot.lane.b32.xlu0 %v1250, 64
        %v1264 = vpop.permute.xlu0 %1263
        %1265 = vrot.lane.b32.xlu0 %v1251, 64
        %v1266 = vpop.permute.xlu0 %1265
        %1267 = vrot.lane.b32.xlu0 %v1252, 64
        %v1268 = vpop.permute.xlu0 %1267
        %vm1277 = vcmask 781824
        %1278 = vst.msk [vmem:[#allocation6] sm:$0xf] %vm1277, %v1254
        %1279 = vst.msk [vmem:[#allocation6 + $0x4] sm:$0xf] %vm1277, %v1256
        %1280 = vst.msk [vmem:[#allocation6 + $0x8] sm:$0xf] %vm1277, %v1258
        %1281 = vst.msk [vmem:[#allocation6 + $0xc] sm:$0xf] %vm1277, %v1260
        %1282 = vst.msk [vmem:[#allocation6 + $0x10] sm:$0xf] %vm1277, %v1262
        %1283 = vst.msk [vmem:[#allocation6 + $0x14] sm:$0xf] %vm1277, %v1264
        %1284 = vst.msk [vmem:[#allocation6 + $0x18] sm:$0xf] %vm1277, %v1266
        %1285 = vst.msk [vmem:[#allocation6 + $0x1c] sm:$0xf] %vm1277, %v1268
        %v1286 = vld [vmem:[#allocation6] sm:$0xf]
        %v1287 = vld [vmem:[#allocation6 + $0x4] sm:$0xf]
        %v1288 = vld [vmem:[#allocation6 + $0x8] sm:$0xf]
        %v1289 = vld [vmem:[#allocation6 + $0xc] sm:$0xf]
        %v1290 = vld [vmem:[#allocation6 + $0x10] sm:$0xf]
        %v1291 = vld [vmem:[#allocation6 + $0x14] sm:$0xf]
        %v1292 = vld [vmem:[#allocation6 + $0x18] sm:$0xf]
        %v1293 = vld [vmem:[#allocation6 + $0x1c] sm:$0xf]
        %v1294 = vld [vmem:[%s3] sm:$0xf]
        %v1295 = vld [vmem:[%s3 + $0x4] sm:$0xf]
        %v1296 = vld [vmem:[%s3 + $0x8] sm:$0xf]
        %v1297 = vld [vmem:[%s3 + $0xc] sm:$0xf]
        %v1298 = vld [vmem:[%s3 + $0x10] sm:$0xf]
        %v1299 = vld [vmem:[%s3 + $0x14] sm:$0xf]
        %v1300 = vld [vmem:[%s3 + $0x18] sm:$0xf]
        %v1301 = vld [vmem:[%s3 + $0x1c] sm:$0xf]
        %v1302 = vld [vmem:[%s3 + $0x20] sm:$0xf]
        %v1303 = vld [vmem:[%s3 + $0x24] sm:$0xf]
        %v1304 = vld [vmem:[%s3 + $0x28] sm:$0xf]
        %v1305 = vld [vmem:[%s3 + $0x2c] sm:$0xf]
        %v1314 = vunpack.c.l.b16 %v1286
        %v1315 = vunpack.c.l.b16 %v1287
        %v1316 = vunpack.c.l.b16 %v1288
        %v1317 = vunpack.c.l.b16 %v1289
        %v1318 = vunpack.c.l.b16 %v1290
        %v1319 = vunpack.c.l.b16 %v1291
        %v1320 = vunpack.c.l.b16 %v1292
        %v1321 = vunpack.c.l.b16 %v1293
        %v1322 = vpack.c.b16 %v1315, %v1314
        %v1323 = vpack.c.b16 %v1317, %v1316
        %v1324 = vpack.c.b16 %v1319, %v1318
        %v1325 = vpack.c.b16 %v1321, %v1320
        %v1338 = vunpack.c.l.b16 %v1294
        %v1339 = vunpack.c.l.b16 %v1295
        %v1340 = vunpack.c.l.b16 %v1296
        %v1341 = vunpack.c.l.b16 %v1297
        %v1342 = vunpack.c.l.b16 %v1298
        %v1343 = vunpack.c.l.b16 %v1299
        %v1344 = vunpack.c.l.b16 %v1300
        %v1345 = vunpack.c.l.b16 %v1301
        %v1346 = vunpack.c.l.b16 %v1302
        %v1347 = vunpack.c.l.b16 %v1303
        %v1348 = vunpack.c.l.b16 %v1304
        %v1349 = vunpack.c.l.b16 %v1305
        %v1350 = vpack.c.b16 %v1339, %v1338
        %v1351 = vpack.c.b16 %v1341, %v1340
        %v1352 = vpack.c.b16 %v1343, %v1342
        %v1353 = vpack.c.b16 %v1345, %v1344
        %v1354 = vpack.c.b16 %v1347, %v1346
        %v1355 = vpack.c.b16 %v1349, %v1348
        %vm1362 = vcmask 785408
        %v1364 = vsel %vm1362, %v1322, 0
        %v1367 = vsel %vm1362, %v1323, 0
        %v1370 = vsel %vm1362, %v1324, 0
        %v1373 = vsel %vm1362, %v1325, 0
        %1375 = vmatprep.subr.bf16.mxu0 0
        %1376 = vmatpush1.bf16.msra.mxu0 0
        %1377 = vmatprep.subr.bf16.mxu0 0
        %1378 = vmatpush1.bf16.msra.mxu0 0
        %1379 = vmatprep.subr.bf16.mxu0 0
        %1380 = vmatpush1.bf16.msra.mxu0 %v1355
        %1381 = vmatprep.subr.bf16.mxu0 0
        %1382 = vmatpush1.bf16.msra.mxu0 %v1354
        %1383 = vmatprep.subr.bf16.mxu0 0
        %1384 = vmatpush1.bf16.msra.mxu0 %v1353
        %1385 = vmatprep.subr.bf16.mxu0 0
        %1386 = vmatpush1.bf16.msra.mxu0 %v1352
        %1387 = vmatprep.subr.bf16.mxu0 0
        %1388 = vmatpush1.bf16.msra.mxu0 %v1351
        %1389 = vmatprep.subr.bf16.mxu0 0
        %1390 = vmatpush1.bf16.msra.mxu0 %v1350
        %1391 = vmatprep.subr.bf16.mxu0 0
        %1392 = vmatpush2.bf16.msra.mxu0 0
        %1393 = vmatprep.subr.bf16.mxu0 0
        %1394 = vmatpush2.bf16.msra.mxu0 0
        %1395 = vmatprep.subr.bf16.mxu0 0
        %1396 = vmatpush2.bf16.msra.mxu0 0
        %1397 = vmatprep.subr.bf16.mxu0 0
        %1398 = vmatpush2.bf16.msra.mxu0 0
        %1399 = vmatprep.subr.bf16.mxu0 0
        %1400 = vmatpush2.bf16.msra.mxu0 0
        %1401 = vmatprep.subr.bf16.mxu0 0
        %1402 = vmatpush2.bf16.msra.mxu0 0
        %1403 = vmatprep.subr.bf16.mxu0 0
        %1404 = vmatpush2.bf16.msra.mxu0 0
        %1405 = vmatprep.subr.bf16.mxu0 0
        %1406 = vmatpush2.bf16.msra.mxu0 0
        %1407 = vmatprep.mubr.bf16.mxu0 0
        %1408 = vmatmul.mubr.bf16.gmra.mxu0 %v1364
        %v1409 = vpop.f32.mrf.mxu0
        %v1410 = vadd.f32 0.0, %v1409
        %v1411 = vpop.f32.mrf.mxu0
        %v1412 = vpop.f32.mrf.mxu0
        %v1413 = vadd.f32 0.0, %v1412
        %v1414 = vpop.f32.mrf.mxu0
        %1415 = vmatprep.mubr.bf16.mxu0 0
        %1416 = vmatmul.mubr.bf16.gmra.mxu0 %v1367
        %v1417 = vpop.f32.mrf.mxu0
        %v1418 = vadd.f32 0.0, %v1417
        %v1419 = vpop.f32.mrf.mxu0
        %v1420 = vpop.f32.mrf.mxu0
        %v1421 = vadd.f32 0.0, %v1420
        %v1422 = vpop.f32.mrf.mxu0
        %1423 = vmatprep.mubr.bf16.mxu0 0
        %1424 = vmatmul.mubr.bf16.gmra.mxu0 %v1370
        %v1425 = vpop.f32.mrf.mxu0
        %v1426 = vadd.f32 0.0, %v1425
        %v1427 = vpop.f32.mrf.mxu0
        %v1428 = vpop.f32.mrf.mxu0
        %v1429 = vadd.f32 0.0, %v1428
        %v1430 = vpop.f32.mrf.mxu0
        %1431 = vmatprep.mubr.bf16.mxu0 0
        %1432 = vmatmul.mubr.bf16.gmra.mxu0 %v1373
        %v1433 = vpop.f32.mrf.mxu0
        %v1434 = vadd.f32 0.0, %v1433
        %v1435 = vpop.f32.mrf.mxu0
        %v1436 = vpop.f32.mrf.mxu0
        %v1437 = vadd.f32 0.0, %v1436
        %v1438 = vpop.f32.mrf.mxu0
        %1439 = vdwg.mxu0
        %1448 = vrot.lane.b32.xlu0 %v1410, 96
        %v1449 = vpop.permute.xlu0 %1448
        %1450 = vrot.lane.b32.xlu0 %v1413, 96
        %v1451 = vpop.permute.xlu0 %1450
        %1452 = vrot.lane.b32.xlu0 %v1418, 96
        %v1453 = vpop.permute.xlu0 %1452
        %1454 = vrot.lane.b32.xlu0 %v1421, 96
        %v1455 = vpop.permute.xlu0 %1454
        %1456 = vrot.lane.b32.xlu0 %v1426, 96
        %v1457 = vpop.permute.xlu0 %1456
        %1458 = vrot.lane.b32.xlu0 %v1429, 96
        %v1459 = vpop.permute.xlu0 %1458
        %1460 = vrot.lane.b32.xlu0 %v1434, 96
        %v1461 = vpop.permute.xlu0 %1460
        %1462 = vrot.lane.b32.xlu0 %v1437, 96
        %v1463 = vpop.permute.xlu0 %1462
        %v1472 = vmax.f32 %v1410, %v1449
        %v1473 = vmax.f32 %v1413, %v1451
        %v1474 = vmax.f32 %v1418, %v1453
        %v1475 = vmax.f32 %v1421, %v1455
        %v1476 = vmax.f32 %v1426, %v1457
        %v1477 = vmax.f32 %v1429, %v1459
        %v1478 = vmax.f32 %v1434, %v1461
        %v1479 = vmax.f32 %v1437, %v1463
        %v1480 = vld [vmem:[%s4] sm:$0x1]
        %v1482 = vlaneseq
        %v1483 = vshrl.u32 %v1482, 7
        %v1484 = vsub.s32 0, %v1483
        %v1485 = vrot.slane %v1480, %v1484
        %v1487 = vadd.f32 %v1472, %v1485
        %v1488 = vadd.f32 %v1473, %v1485
        %v1489 = vadd.f32 %v1474, %v1485
        %v1490 = vadd.f32 %v1475, %v1485
        %v1491 = vadd.f32 %v1476, %v1485
        %v1492 = vadd.f32 %v1477, %v1485
        %v1493 = vadd.f32 %v1478, %v1485
        %v1494 = vadd.f32 %v1479, %v1485
        %v1495 = vmax.f32 %v1487, 0.0
        %v1496 = vmax.f32 %v1488, 0.0
        %v1497 = vmax.f32 %v1489, 0.0
        %v1498 = vmax.f32 %v1490, 0.0
        %v1499 = vmax.f32 %v1491, 0.0
        %v1500 = vmax.f32 %v1492, 0.0
        %v1501 = vmax.f32 %v1493, 0.0
        %v1502 = vmax.f32 %v1494, 0.0
        %1503 = vst.msk [vmem:[#allocation7] sm:$0xff] %vm1026, %v1495
        %1504 = vst.msk [vmem:[#allocation7 + $0x8] sm:$0xff] %vm1026, %v1496
        %1505 = vst.msk [vmem:[#allocation7 + $0x10] sm:$0xff] %vm1026, %v1497
        %1506 = vst.msk [vmem:[#allocation7 + $0x18] sm:$0xff] %vm1026, %v1498
        %1507 = vst.msk [vmem:[#allocation7 + $0x20] sm:$0xff] %vm1026, %v1499
        %1508 = vst.msk [vmem:[#allocation7 + $0x28] sm:$0xff] %vm1026, %v1500
        %1509 = vst.msk [vmem:[#allocation7 + $0x30] sm:$0xff] %vm1026, %v1501
        %1510 = vst.msk [vmem:[#allocation7 + $0x38] sm:$0xff] %vm1026, %v1502
        %v1511 = vld [vmem:[%s6] sm:$0x1]
        %v1512 = vld [vmem:[#allocation7] ss:$8 sm:$0xf]
        %v1513 = vld [vmem:[#allocation7] ss:$8 sm:$0xf0]
        %v1514 = vor.u32 %v1512, %v1513
        %s1515 = scalar_lea.vmem [#allocation7], 1
        %v1516 = vld [vmem:[%s1515] ss:$8 sm:$0xf]
        %v1517 = vld [vmem:[%s1515] ss:$8 sm:$0xf0]
        %v1518 = vor.u32 %v1516, %v1517
        %v1519 = vmax.f32 %v1514, %v1518
        %v1520 = vpack.c.bf16 %v1519, %v1519
        %v1521 = vld [vmem:[%s5] sm:$0xf]
        %v1522 = vld [vmem:[%s5 + $0x4] sm:$0xf]
        %v1523 = vld [vmem:[%s5 + $0x8] sm:$0xf]
        %v1524 = vld [vmem:[%s5 + $0xc] sm:$0xf]
        %v1529 = vunpack.c.l.b16 %v1521
        %v1530 = vunpack.c.l.b16 %v1522
        %v1531 = vunpack.c.l.b16 %v1523
        %v1532 = vunpack.c.l.b16 %v1524
        %v1533 = vpack.c.b16 %v1530, %v1529
        %v1534 = vpack.c.b16 %v1532, %v1531
        %v1538 = vsel %vm1026, %v1520, 0
        %1540 = vmatprep.subr.bf16.mxu0 0
        %1541 = vmatpush1.bf16.msra.mxu0 0
        %1542 = vmatprep.subr.bf16.mxu0 0
        %1543 = vmatpush1.bf16.msra.mxu0 0
        %1544 = vmatprep.subr.bf16.mxu0 0
        %1545 = vmatpush1.bf16.msra.mxu0 0
        %1546 = vmatprep.subr.bf16.mxu0 0
        %1547 = vmatpush1.bf16.msra.mxu0 0
        %1548 = vmatprep.subr.bf16.mxu0 0
        %1549 = vmatpush1.bf16.msra.mxu0 0
        %1550 = vmatprep.subr.bf16.mxu0 0
        %1551 = vmatpush1.bf16.msra.mxu0 0
        %1552 = vmatprep.subr.bf16.mxu0 0
        %1553 = vmatpush1.bf16.msra.mxu0 %v1534
        %1554 = vmatprep.subr.bf16.mxu0 0
        %1555 = vmatpush1.bf16.msra.mxu0 %v1533
        %1556 = vmatprep.subr.bf16.mxu0 0
        %1557 = vmatpush2.bf16.msra.mxu0 0
        %1558 = vmatprep.subr.bf16.mxu0 0
        %1559 = vmatpush2.bf16.msra.mxu0 0
        %1560 = vmatprep.subr.bf16.mxu0 0
        %1561 = vmatpush2.bf16.msra.mxu0 0
        %1562 = vmatprep.subr.bf16.mxu0 0
        %1563 = vmatpush2.bf16.msra.mxu0 0
        %1564 = vmatprep.subr.bf16.mxu0 0
        %1565 = vmatpush2.bf16.msra.mxu0 0
        %1566 = vmatprep.subr.bf16.mxu0 0
        %1567 = vmatpush2.bf16.msra.mxu0 0
        %1568 = vmatprep.subr.bf16.mxu0 0
        %1569 = vmatpush2.bf16.msra.mxu0 0
        %1570 = vmatprep.subr.bf16.mxu0 0
        %1571 = vmatpush2.bf16.msra.mxu0 0
        %1572 = vmatprep.mubr.bf16.mxu0 0
        %1573 = vmatmul.mubr.bf16.gmra.mxu0 %v1538
        %v1574 = vpop.f32.mrf.mxu0
        %v1575 = vadd.f32 0.0, %v1574
        %v1576 = vpop.f32.mrf.mxu0
        %v1577 = vpop.f32.mrf.mxu0
        %v1578 = vpop.f32.mrf.mxu0
        %1579 = vdwg.mxu0
        %v1581 = vlaneseq
        %v1582 = vshrl.u32 %v1581, 7
        %v1583 = vsub.s32 0, %v1582
        %v1584 = vrot.slane %v1511, %v1583
        %v1586 = vadd.f32 %v1584, %v1575
        %s1587 = scalar_lea.vmem [#allocation7], 2
        %v1588 = vld [vmem:[%s1587] ss:$8 sm:$0xf]
        %v1589 = vld [vmem:[%s1587] ss:$8 sm:$0xf0]
        %v1590 = vor.u32 %v1588, %v1589
        %s1591 = scalar_lea.vmem [#allocation7], 3
        %v1592 = vld [vmem:[%s1591] ss:$8 sm:$0xf]
        %v1593 = vld [vmem:[%s1591] ss:$8 sm:$0xf0]
        %v1594 = vor.u32 %v1592, %v1593
        %v1595 = vmax.f32 %v1590, %v1594
        %v1596 = vpack.c.bf16 %v1595, %v1595
        %s1597 = scalar_lea.vmem %s5, 16
        %v1598 = vld [vmem:[%s1597] sm:$0xf]
        %v1599 = vld [vmem:[%s1597 + $0x4] sm:$0xf]
        %v1600 = vld [vmem:[%s1597 + $0x8] sm:$0xf]
        %v1601 = vld [vmem:[%s1597 + $0xc] sm:$0xf]
        %v1606 = vunpack.c.l.b16 %v1598
        %v1607 = vunpack.c.l.b16 %v1599
        %v1608 = vunpack.c.l.b16 %v1600
        %v1609 = vunpack.c.l.b16 %v1601
        %v1610 = vpack.c.b16 %v1607, %v1606
        %v1611 = vpack.c.b16 %v1609, %v1608
        %v1615 = vsel %vm1026, %v1596, 0
        %1617 = vmatprep.subr.bf16.mxu0 0
        %1618 = vmatpush1.bf16.msra.mxu0 0
        %1619 = vmatprep.subr.bf16.mxu0 0
        %1620 = vmatpush1.bf16.msra.mxu0 0
        %1621 = vmatprep.subr.bf16.mxu0 0
        %1622 = vmatpush1.bf16.msra.mxu0 0
        %1623 = vmatprep.subr.bf16.mxu0 0
        %1624 = vmatpush1.bf16.msra.mxu0 0
        %1625 = vmatprep.subr.bf16.mxu0 0
        %1626 = vmatpush1.bf16.msra.mxu0 0
        %1627 = vmatprep.subr.bf16.mxu0 0
        %1628 = vmatpush1.bf16.msra.mxu0 0
        %1629 = vmatprep.subr.bf16.mxu0 0
        %1630 = vmatpush1.bf16.msra.mxu0 %v1611
        %1631 = vmatprep.subr.bf16.mxu0 0
        %1632 = vmatpush1.bf16.msra.mxu0 %v1610
        %1633 = vmatprep.subr.bf16.mxu0 0
        %1634 = vmatpush2.bf16.msra.mxu0 0
        %1635 = vmatprep.subr.bf16.mxu0 0
        %1636 = vmatpush2.bf16.msra.mxu0 0
        %1637 = vmatprep.subr.bf16.mxu0 0
        %1638 = vmatpush2.bf16.msra.mxu0 0
        %1639 = vmatprep.subr.bf16.mxu0 0
        %1640 = vmatpush2.bf16.msra.mxu0 0
        %1641 = vmatprep.subr.bf16.mxu0 0
        %1642 = vmatpush2.bf16.msra.mxu0 0
        %1643 = vmatprep.subr.bf16.mxu0 0
        %1644 = vmatpush2.bf16.msra.mxu0 0
        %1645 = vmatprep.subr.bf16.mxu0 0
        %1646 = vmatpush2.bf16.msra.mxu0 0
        %1647 = vmatprep.subr.bf16.mxu0 0
        %1648 = vmatpush2.bf16.msra.mxu0 0
        %1649 = vmatprep.mubr.bf16.mxu0 0
        %1650 = vmatmul.mubr.bf16.gmra.mxu0 %v1615
        %v1651 = vpop.f32.mrf.mxu0
        %v1652 = vadd.f32 0.0, %v1651
        %v1653 = vpop.f32.mrf.mxu0
        %v1654 = vpop.f32.mrf.mxu0
        %v1655 = vpop.f32.mrf.mxu0
        %1656 = vdwg.mxu0
        %v1657 = vadd.f32 %v1586, %v1652
        %s1658 = scalar_lea.vmem [#allocation7], 4
        %v1659 = vld [vmem:[%s1658] ss:$8 sm:$0xf]
        %v1660 = vld [vmem:[%s1658] ss:$8 sm:$0xf0]
        %v1661 = vor.u32 %v1659, %v1660
        %s1662 = scalar_lea.vmem [#allocation7], 5
        %v1663 = vld [vmem:[%s1662] ss:$8 sm:$0xf]
        %v1664 = vld [vmem:[%s1662] ss:$8 sm:$0xf0]
        %v1665 = vor.u32 %v1663, %v1664
        %v1666 = vmax.f32 %v1661, %v1665
        %v1667 = vpack.c.bf16 %v1666, %v1666
        %s1668 = scalar_lea.vmem %s5, 32
        %v1669 = vld [vmem:[%s1668] sm:$0xf]
        %v1670 = vld [vmem:[%s1668 + $0x4] sm:$0xf]
        %v1671 = vld [vmem:[%s1668 + $0x8] sm:$0xf]
        %v1672 = vld [vmem:[%s1668 + $0xc] sm:$0xf]
        %v1677 = vunpack.c.l.b16 %v1669
        %v1678 = vunpack.c.l.b16 %v1670
        %v1679 = vunpack.c.l.b16 %v1671
        %v1680 = vunpack.c.l.b16 %v1672
        %v1681 = vpack.c.b16 %v1678, %v1677
        %v1682 = vpack.c.b16 %v1680, %v1679
        %v1686 = vsel %vm1026, %v1667, 0
        %1688 = vmatprep.subr.bf16.mxu0 0
        %1689 = vmatpush1.bf16.msra.mxu0 0
        %1690 = vmatprep.subr.bf16.mxu0 0
        %1691 = vmatpush1.bf16.msra.mxu0 0
        %1692 = vmatprep.subr.bf16.mxu0 0
        %1693 = vmatpush1.bf16.msra.mxu0 0
        %1694 = vmatprep.subr.bf16.mxu0 0
        %1695 = vmatpush1.bf16.msra.mxu0 0
        %1696 = vmatprep.subr.bf16.mxu0 0
        %1697 = vmatpush1.bf16.msra.mxu0 0
        %1698 = vmatprep.subr.bf16.mxu0 0
        %1699 = vmatpush1.bf16.msra.mxu0 0
        %1700 = vmatprep.subr.bf16.mxu0 0
        %1701 = vmatpush1.bf16.msra.mxu0 %v1682
        %1702 = vmatprep.subr.bf16.mxu0 0
        %1703 = vmatpush1.bf16.msra.mxu0 %v1681
        %1704 = vmatprep.subr.bf16.mxu0 0
        %1705 = vmatpush2.bf16.msra.mxu0 0
        %1706 = vmatprep.subr.bf16.mxu0 0
        %1707 = vmatpush2.bf16.msra.mxu0 0
        %1708 = vmatprep.subr.bf16.mxu0 0
        %1709 = vmatpush2.bf16.msra.mxu0 0
        %1710 = vmatprep.subr.bf16.mxu0 0
        %1711 = vmatpush2.bf16.msra.mxu0 0
        %1712 = vmatprep.subr.bf16.mxu0 0
        %1713 = vmatpush2.bf16.msra.mxu0 0
        %1714 = vmatprep.subr.bf16.mxu0 0
        %1715 = vmatpush2.bf16.msra.mxu0 0
        %1716 = vmatprep.subr.bf16.mxu0 0
        %1717 = vmatpush2.bf16.msra.mxu0 0
        %1718 = vmatprep.subr.bf16.mxu0 0
        %1719 = vmatpush2.bf16.msra.mxu0 0
        %1720 = vmatprep.mubr.bf16.mxu0 0
        %1721 = vmatmul.mubr.bf16.gmra.mxu0 %v1686
        %v1722 = vpop.f32.mrf.mxu0
        %v1723 = vadd.f32 0.0, %v1722
        %v1724 = vpop.f32.mrf.mxu0
        %v1725 = vpop.f32.mrf.mxu0
        %v1726 = vpop.f32.mrf.mxu0
        %1727 = vdwg.mxu0
        %v1728 = vadd.f32 %v1657, %v1723
        %s1729 = scalar_lea.vmem [#allocation7], 6
        %v1730 = vld [vmem:[%s1729] ss:$8 sm:$0xf]
        %v1731 = vld [vmem:[%s1729] ss:$8 sm:$0xf0]
        %v1732 = vor.u32 %v1730, %v1731
        %s1733 = scalar_lea.vmem [#allocation7], 7
        %v1734 = vld [vmem:[%s1733] ss:$8 sm:$0xf]
        %v1735 = vld [vmem:[%s1733] ss:$8 sm:$0xf0]
        %v1736 = vor.u32 %v1734, %v1735
        %v1737 = vmax.f32 %v1732, %v1736
        %v1738 = vpack.c.bf16 %v1737, %v1737
        %s1739 = scalar_lea.vmem %s5, 48
        %v1740 = vld [vmem:[%s1739] sm:$0xf]
        %v1741 = vld [vmem:[%s1739 + $0x4] sm:$0xf]
        %v1742 = vld [vmem:[%s1739 + $0x8] sm:$0xf]
        %v1743 = vld [vmem:[%s1739 + $0xc] sm:$0xf]
        %v1748 = vunpack.c.l.b16 %v1740
        %v1749 = vunpack.c.l.b16 %v1741
        %v1750 = vunpack.c.l.b16 %v1742
        %v1751 = vunpack.c.l.b16 %v1743
        %v1752 = vpack.c.b16 %v1749, %v1748
        %v1753 = vpack.c.b16 %v1751, %v1750
        %v1757 = vsel %vm1026, %v1738, 0
        %1759 = vmatprep.subr.bf16.mxu0 0
        %1760 = vmatpush1.bf16.msra.mxu0 0
        %1761 = vmatprep.subr.bf16.mxu0 0
        %1762 = vmatpush1.bf16.msra.mxu0 0
        %1763 = vmatprep.subr.bf16.mxu0 0
        %1764 = vmatpush1.bf16.msra.mxu0 0
        %1765 = vmatprep.subr.bf16.mxu0 0
        %1766 = vmatpush1.bf16.msra.mxu0 0
        %1767 = vmatprep.subr.bf16.mxu0 0
        %1768 = vmatpush1.bf16.msra.mxu0 0
        %1769 = vmatprep.subr.bf16.mxu0 0
        %1770 = vmatpush1.bf16.msra.mxu0 0
        %1771 = vmatprep.subr.bf16.mxu0 0
        %1772 = vmatpush1.bf16.msra.mxu0 %v1753
        %1773 = vmatprep.subr.bf16.mxu0 0
        %1774 = vmatpush1.bf16.msra.mxu0 %v1752
        %1775 = vmatprep.subr.bf16.mxu0 0
        %1776 = vmatpush2.bf16.msra.mxu0 0
        %1777 = vmatprep.subr.bf16.mxu0 0
        %1778 = vmatpush2.bf16.msra.mxu0 0
        %1779 = vmatprep.subr.bf16.mxu0 0
        %1780 = vmatpush2.bf16.msra.mxu0 0
        %1781 = vmatprep.subr.bf16.mxu0 0
        %1782 = vmatpush2.bf16.msra.mxu0 0
        %1783 = vmatprep.subr.bf16.mxu0 0
        %1784 = vmatpush2.bf16.msra.mxu0 0
        %1785 = vmatprep.subr.bf16.mxu0 0
        %1786 = vmatpush2.bf16.msra.mxu0 0
        %1787 = vmatprep.subr.bf16.mxu0 0
        %1788 = vmatpush2.bf16.msra.mxu0 0
        %1789 = vmatprep.subr.bf16.mxu0 0
        %1790 = vmatpush2.bf16.msra.mxu0 0
        %1791 = vmatprep.mubr.bf16.mxu0 0
        %1792 = vmatmul.mubr.bf16.gmra.mxu0 %v1757
        %v1793 = vpop.f32.mrf.mxu0
        %v1794 = vadd.f32 0.0, %v1793
        %v1795 = vpop.f32.mrf.mxu0
        %v1796 = vpop.f32.mrf.mxu0
        %v1797 = vpop.f32.mrf.mxu0
        %1798 = vdwg.mxu0
        %v1799 = vadd.f32 %v1728, %v1794
        %vm1800 = vcmask 31744
        %v1801 = vsel %vm1800, %v1799, -inf
        %1802 = vmax.xlane.f32.xlu0 %v1801
        %v1803 = vpop.xlane.xlu0 %1802
        %v1804 = vsub.f32 %v1799, %v1803
        %v1805 = vmul.f32 %v1804, 1.442695
        %v1806 = vpow.pop %v1805
        %v1807 = vsel %vm1800, %v1806, 0.0
        %1808 = vadd.xlane.f32.xlu0 %v1807
        %v1809 = vpop.xlane.xlu0 %1808
        %v1810 = vrcp.pop %v1809
        %v1811 = vmul.f32 %v1806, %v1810
        %1812 = vst.msk [vmem:[%s298] sm:$0xff] %vm1800, %v1811
        %p1813 = scmp.lt.s32.totalorder %s21, 1
        %s1814 = scalar_select %p1813, %s21, 1
        %s1815 = smul.addr %s1814, 8
        %s1816 = scalar_lea.vmem %s7, %s1815
        // Predicated region
        $region53: #{tpu_custom_call.1} parent=47 // pred_check
          %p1817 = pneg %p191
        $region54: #{tpu_custom_call.1} parent=47 // pred_check_branch
          %1819 = sbr.rel (%p1817) target = $region56
        $region55: #{tpu_custom_call.1} parent=47 // pred_region
          _
        $region56: #{tpu_custom_call.1} parent=47 // pred_fallthru
          _
      $region48: #{tpu_custom_call.1} parent=5 // pred_fallthru
        _
      %p1820 = scmp.le.s32.totalorder 2, %s16
      // Predicated region
      $region57: #{tpu_custom_call.1} parent=5 // pred_check
        %p1821 = pneg %p1820
      $region58: #{tpu_custom_call.1} parent=5 // pred_check_branch
        %1823 = sbr.rel (%p1821) target = $region60
      $region59: #{tpu_custom_call.1} parent=5 // pred_region
        %s1824 = ssub.s32 %s16, 2
        // Predicated region
        $region61: #{tpu_custom_call.1} parent=59 // pred_check
          %p1825 = pneg %p197
        $region62: #{tpu_custom_call.1} parent=59 // pred_check_branch
          %1827 = sbr.rel (%p1825) target = $region64
        $region63: #{tpu_custom_call.1} parent=59 // pred_region
          %p1828 = scmp.lt.s32.totalorder %s22, 1
          %s1829 = scalar_select %p1828, %s22, 1
          %s1830 = smul.addr %s1829, 8
          %s1831 = scalar_lea.vmem %s7, %s1830
        $region64: #{tpu_custom_call.1} parent=59 // pred_fallthru
          _
      $region60: #{tpu_custom_call.1} parent=5 // pred_fallthru
        _
    $region6: #{tpu_custom_call.1} parent=1 // loop_footer
      %s20 = sadd.s32 1, %s16
    $region7: #{tpu_custom_call.1} parent=1 // loop_footer_branch
      %15 = sbr.rel target = $region3
    $region8: #{tpu_custom_call.1} parent=1 // loop_exit
      _
    %1832 = vsyncpa [#allocation9], 1
    %s1833 = scalar_lea.sflag [#allocation9], 1
    %1834 = vsyncpa %s1833, 1

</llo_original>
